<compile_context>
chip_gen: v7x
topology: tpu7x:2x2x1
jax: 0.10.0
libtpu: 0.0.40
codegen_flags: <defaults>
</compile_context>

<pallas_src>
import functools

import jax
import jax.numpy as jnp
from jax import lax
from jax.experimental import pallas as pl
from jax.experimental.pallas import tpu as pltpu


def _lstm_kernel(xp_ref, whh_ref, wlin_ref, blin_ref, out_ref, h_ref, c_ref,
                 *, seq_len, chunk, b_pad, h_pad):
    tc = pl.program_id(0)
    nc = pl.num_programs(0)
    H = h_pad

    @pl.when(tc == 0)
    def _():
        h_ref[...] = jnp.zeros_like(h_ref)
        c_ref[...] = jnp.zeros_like(c_ref)

    def step(s, carry):
        h, c = carry
        row0 = pl.multiple_of(s * b_pad, b_pad)
        # Pre-projected x already contains the (g-scaled) fused bias.
        # Recurrence matmul on the MXU in bf16, f32 accumulation; W_hh stays a
        # VMEM-fed operand (not materialized into vregs).
        gates = (xp_ref[pl.ds(row0, b_pad), :]
                 + jnp.dot(h.astype(jnp.bfloat16), whh_ref[...],
                           preferred_element_type=jnp.float32))
        sg = jax.nn.sigmoid(gates)            # one full-width (B, 4*H_pad) EUP op
        i_g = sg[:, 0 * H:1 * H]              # 128-lane aligned full-vreg slices
        f_g = sg[:, 1 * H:2 * H]
        g_g = 2.0 * sg[:, 2 * H:3 * H] - 1.0  # tanh(z) via 2*sigmoid(2z) - 1
        o_g = sg[:, 3 * H:4 * H]
        c = f_g * c + i_g * g_g
        h = o_g * jnp.tanh(c)
        return h, c

    carry0 = (h_ref[...], c_ref[...])
    if seq_len % chunk == 0:
        # Static trip count: full unroll for short chunks, partial unroll for
        # long ones (keeps LLO scheduler visibility without vreg blowup).
        h, c = lax.fori_loop(0, chunk, step, carry0,
                             unroll=(True if chunk <= 16 else 8))
    else:
        steps = jnp.minimum(chunk, seq_len - tc * chunk)
        h, c = lax.fori_loop(0, steps, step, carry0)

    h_ref[...] = h
    c_ref[...] = c

    # Final linear only on the last chunk -- the output block is VMEM-resident
    # across the 'arbitrary' axis, so only the last write matters.
    @pl.when(tc == nc - 1)
    def _():
        out_ref[...] = (jnp.dot(h, wlin_ref[...],
                                preferred_element_type=jnp.float32)
                        + blin_ref[...]).astype(out_ref.dtype)


def _pick_chunk(T, max_chunk):
    """Largest divisor of T that is <= max_chunk (so the static-trip unrolled
    branch is taken); fall back to the dynamic-remainder path only if that
    divisor is degenerate."""
    best = 1
    for c in range(min(max_chunk, T), 0, -1):
        if T % c == 0:
            best = c
            break
    if best >= 8 or T <= 8:
        return best
    return min(max_chunk, T)


def _pad_gate_cols(w, H, H_pad):
    """(rows, 4H) -> (rows, 4H_pad), placing gate k at [k*H_pad : k*H_pad+H]."""
    out = jnp.zeros((w.shape[0], 4 * H_pad), w.dtype)
    for k in range(4):
        out = out.at[:, k * H_pad:k * H_pad + H].set(w[:, k * H:(k + 1) * H])
    return out


def lstm_model_forward(input_seq, params, *, max_chunk=64):
    """input_seq: (T, B, I) float32 (time-major, like nn.LSTM batch_first=False).
    Returns predictions[-1]: (B, output_size)."""
    T, B, I = input_seq.shape
    H = params["w_hh"].shape[1]
    O = params["w_lin"].shape[0]

    # ---- padding to TPU-friendly tiles ------------------------------------
    B_pad = -(-B // 8) * 8                 # sublane multiple
    H_pad = -(-H // 128) * 128             # 128-lane aligned gate slices
    O_pad = 128                            # lane-dense output store

    chunk = _pick_chunk(T, max_chunk)
    # Cap chunk so the double-buffered projection block stays small in VMEM.
    while chunk > 8 and 2 * chunk * B_pad * 4 * H_pad * 4 > (8 << 20):
        chunk = max(8, chunk // 2)
    n_chunks = -(-T // chunk)
    T_pad = n_chunks * chunk

    # PyTorch gate order i, f, g, o.  Pre-scale the g-gate by 2 so a single
    # full-width sigmoid recovers tanh via 2*sigmoid(2z) - 1.
    g_scale = jnp.concatenate([
        jnp.ones((2 * H,), jnp.float32),
        jnp.full((H,), 2.0, jnp.float32),
        jnp.ones((H,), jnp.float32),
    ])

    wih_t = params["w_ih"].T.astype(jnp.float32) * g_scale[None, :]      # (I, 4H)
    whh_t = params["w_hh"].T.astype(jnp.float32) * g_scale[None, :]      # (H, 4H)
    bias = ((params["b_ih"] + params["b_hh"]).astype(jnp.float32)
            * g_scale)[None, :]                                          # (1, 4H)

    wih_tp = _pad_gate_cols(wih_t, H, H_pad)                             # (I, 4H_pad)
    bias_p = _pad_gate_cols(bias, H, H_pad)                              # (1, 4H_pad)
    whh_tp = jnp.zeros((H_pad, 4 * H_pad), jnp.float32)
    whh_tp = whh_tp.at[:H, :].set(_pad_gate_cols(whh_t, H, H_pad))
    whh_bf = whh_tp.astype(jnp.bfloat16)                                 # MXU operand

    wlin_tp = jnp.zeros((H_pad, O_pad), jnp.float32)
    wlin_tp = wlin_tp.at[:H, :O].set(params["w_lin"].T.astype(jnp.float32))
    blin_p = jnp.zeros((1, O_pad), jnp.float32)
    blin_p = blin_p.at[:, :O].set(params["b_lin"].astype(jnp.float32))

    # ---- time-parallel input projection as an XLA pre-pass -----------------
    # Optimally shaped, fully parallel over time; the serial Pallas kernel then
    # consumes lane-dense (chunk*B_pad, 4*H_pad) blocks.
    x = jnp.zeros((T_pad, B_pad, I), jnp.float32)
    x = x.at[:T, :B, :].set(input_seq.astype(jnp.float32))
    xp = x.reshape(T_pad * B_pad, I) @ wih_tp + bias_p                   # f32

    rows = chunk * B_pad
    kernel = functools.partial(_lstm_kernel, seq_len=T, chunk=chunk,
                               b_pad=B_pad, h_pad=H_pad)

    grid_spec = pltpu.PrefetchScalarGridSpec(
        num_scalar_prefetch=0,
        grid=(n_chunks,),
        in_specs=[
            pl.BlockSpec((rows, 4 * H_pad), lambda c: (c, 0)),     # xp chunk
            pl.BlockSpec((H_pad, 4 * H_pad), lambda c: (0, 0)),    # W_hh^T bf16 (resident)
            pl.BlockSpec((H_pad, O_pad), lambda c: (0, 0)),        # W_lin^T (padded)
            pl.BlockSpec((1, O_pad), lambda c: (0, 0)),            # b_lin (padded)
        ],
        out_specs=pl.BlockSpec((B_pad, O_pad), lambda c: (0, 0)),
        scratch_shapes=[
            pltpu.VMEM((B_pad, H_pad), jnp.float32),               # h
            pltpu.VMEM((B_pad, H_pad), jnp.float32),               # c
        ],
    )

    # Explicit VMEM budget (double-buffered xp block + resident weights +
    # scratch), capped under v7x's 64 MiB physical VMEM.
    vmem_bytes = (2 * rows * 4 * H_pad * 4
                  + H_pad * 4 * H_pad * 2
                  + H_pad * O_pad * 4 + O_pad * 4
                  + B_pad * O_pad * 4
                  + 2 * B_pad * H_pad * 4)
    vmem_limit = int(min(max(2 * vmem_bytes, 16 << 20), 64 << 20))

    out_pad = pl.pallas_call(
        kernel,
        out_shape=jax.ShapeDtypeStruct((B_pad, O_pad), jnp.float32),
        grid_spec=grid_spec,
        compiler_params=pltpu.CompilerParams(
            dimension_semantics=("arbitrary",),    # time recurrence is serial
            vmem_limit_bytes=vmem_limit),
    )(xp, whh_bf, wlin_tp, blin_p)

    return out_pad[:B, :O]


def _reference_forward(input_seq, params):
    """Pure-JAX reference mirroring PyTorch nn.LSTM + nn.Linear semantics."""
    T, B, I = input_seq.shape
    H = params["w_hh"].shape[1]
    h = jnp.zeros((B, H), jnp.float32)
    c = jnp.zeros((B, H), jnp.float32)
    wih, whh = params["w_ih"], params["w_hh"]
    b = params["b_ih"] + params["b_hh"]
    for t in range(T):
        gates = input_seq[t] @ wih.T + h @ whh.T + b
        i_g = jax.nn.sigmoid(gates[:, 0 * H:1 * H])
        f_g = jax.nn.sigmoid(gates[:, 1 * H:2 * H])
        g_g = jnp.tanh(gates[:, 2 * H:3 * H])
        o_g = jax.nn.sigmoid(gates[:, 3 * H:4 * H])
        c = f_g * c + i_g * g_g
        h = o_g * jnp.tanh(c)
    return h @ params["w_lin"].T + params["b_lin"]


def init_params(key, input_size, hidden_size, output_size):
    """Deterministic init; shapes match nn.LSTM / nn.Linear parameters."""
    ks = jax.random.split(key, 6)
    s = 1.0 / jnp.sqrt(hidden_size)
    return {
        "w_ih": jax.random.uniform(ks[0], (4 * hidden_size, input_size),
                                   jnp.float32, -s, s),
        "w_hh": jax.random.uniform(ks[1], (4 * hidden_size, hidden_size),
                                   jnp.float32, -s, s),
        "b_ih": jax.random.uniform(ks[2], (4 * hidden_size,), jnp.float32, -s, s),
        "b_hh": jax.random.uniform(ks[3], (4 * hidden_size,), jnp.float32, -s, s),
        "w_lin": jax.random.uniform(ks[4], (output_size, hidden_size),
                                    jnp.float32, -s, s),
        "b_lin": jax.random.uniform(ks[5], (output_size,), jnp.float32, -s, s),
    }


if __name__ == "__main__":
    # Small shapes consistent with LSTMModel(input_size, hidden_layer_size, output_size)
    T, B, I, H, O = 8, 2, 4, 32, 1

    key = jax.random.PRNGKey(0)
    k_params, k_x = jax.random.split(key)
    params = init_params(k_params, input_size=I, hidden_size=H, output_size=O)
    input_seq = jax.random.normal(k_x, (T, B, I), jnp.float32)   # time-major

    out = lstm_model_forward(input_seq, params)
    out = jax.block_until_ready(out)

    ref = _reference_forward(input_seq, params)
    assert out.shape == (B, O), out.shape
    # bf16 MXU operands on the recurrence -> slightly looser tolerance than f32.
    assert jnp.allclose(out, ref, atol=2e-2, rtol=2e-2), (out, ref)

    print("KERNEL_OK")
</pallas_src>

<mosaic_0001>
module attributes {stable_mosaic.version = 11 : i64} {
  func.func @_lstm_kernel(%arg0: i32, %arg1: memref<64x512xf32, #tpu.memory_space<vmem>>, %arg2: memref<128x512xbf16, #tpu.memory_space<vmem>>, %arg3: memref<128x128xf32, #tpu.memory_space<vmem>>, %arg4: memref<1x128xf32, #tpu.memory_space<vmem>>, %arg5: memref<8x128xf32, #tpu.memory_space<vmem>>, %arg6: memref<8x128xf32, #tpu.memory_space<vmem>>, %arg7: memref<8x128xf32, #tpu.memory_space<vmem>>) attributes {dimension_semantics = [#tpu.dimension_semantics<arbitrary>], iteration_bounds = array<i64: 1>, scalar_prefetch = 0 : i64, scratch_operands = 2 : i64, tpu.core_type = #tpu.core_type<tc>, window_params = [{transform_indices = @transform_0, window_bounds = array<i64: 64, 512>}, {pipeline_mode = #tpu.pipeline_mode<synchronous>, transform_indices = @transform_1, window_bounds = array<i64: 128, 512>}, {pipeline_mode = #tpu.pipeline_mode<synchronous>, transform_indices = @transform_2, window_bounds = array<i64: 128, 128>}, {pipeline_mode = #tpu.pipeline_mode<synchronous>, transform_indices = @transform_3, window_bounds = array<i64: 1, 128>}, {pipeline_mode = #tpu.pipeline_mode<synchronous>, transform_indices = @transform_4, window_bounds = array<i64: 8, 128>}]} {
    %c0_i32 = arith.constant 0 : i32
    %0 = arith.cmpi eq, %arg0, %c0_i32 : i32
    %1 = arith.extui %0 : i1 to i32
    %c0_i32_0 = arith.constant 0 : i32
    %2 = arith.cmpi ne, %1, %c0_i32_0 : i32
    scf.if %2 {
      %cst_74 = arith.constant 0.000000e+00 : f32
      %218 = vector.broadcast %cst_74 : f32 to vector<8x128xf32>
      %c0_75 = arith.constant 0 : index
      %c0_76 = arith.constant 0 : index
      %219 = vector.load %arg6[%c0_75, %c0_76] : memref<8x128xf32, #tpu.memory_space<vmem>>, vector<8x128xf32>
      tpu.vector_store %arg6[%c0_75, %c0_76], %218 {strides = array<i32>} : memref<8x128xf32, #tpu.memory_space<vmem>>, vector<8x128xf32>,
      %cst_77 = arith.constant 0.000000e+00 : f32
      %220 = vector.broadcast %cst_77 : f32 to vector<8x128xf32>
      %c0_78 = arith.constant 0 : index
      %c0_79 = arith.constant 0 : index
      %221 = vector.load %arg7[%c0_78, %c0_79] : memref<8x128xf32, #tpu.memory_space<vmem>>, vector<8x128xf32>
      tpu.vector_store %arg7[%c0_78, %c0_79], %220 {strides = array<i32>} : memref<8x128xf32, #tpu.memory_space<vmem>>, vector<8x128xf32>,
    } else {
    }
    %c0 = arith.constant 0 : index
    %c0_1 = arith.constant 0 : index
    %3 = vector.load %arg6[%c0, %c0_1] : memref<8x128xf32, #tpu.memory_space<vmem>>, vector<8x128xf32>
    %c0_2 = arith.constant 0 : index
    %c0_3 = arith.constant 0 : index
    %4 = vector.load %arg7[%c0_2, %c0_3] : memref<8x128xf32, #tpu.memory_space<vmem>>, vector<8x128xf32>
    %c0_i32_4 = arith.constant 0 : i32
    %c8_i32 = arith.constant 8 : i32
    %5 = arith.muli %c0_i32_4, %c8_i32 : i32
    %6 = tpu.assume_multiple %5, 8 : i32
    %7 = arith.index_cast %6 : i32 to index
    %c0_5 = arith.constant 0 : index
    %8 = vector.load %arg1[%7, %c0_5] : memref<64x512xf32, #tpu.memory_space<vmem>>, vector<8x512xf32>
    %9 = arith.truncf %3 : vector<8x128xf32> to vector<8x128xbf16>
    %c0_6 = arith.constant 0 : index
    %c0_7 = arith.constant 0 : index
    %10 = vector.load %arg2[%c0_6, %c0_7] : memref<128x512xbf16, #tpu.memory_space<vmem>>, vector<128x512xbf16>
    %cst = arith.constant dense<0.000000e+00> : vector<8x512xf32>
    %11 = tpu.matmul %9, %10, %cst {dimension_numbers = #tpu.dot_dimension_numbers<[1], [0], [0], [1], [0, 0, 1, 1], [], []>} : vector<8x128xbf16>, vector<128x512xbf16>, vector<8x512xf32> -> vector<8x512xf32>
    %12 = arith.addf %8, %11 : vector<8x512xf32>
    %13 = arith.negf %12 : vector<8x512xf32>
    %14 = math.exp %13 : vector<8x512xf32>
    %cst_8 = arith.constant 1.000000e+00 : f32
    %15 = vector.broadcast %cst_8 : f32 to vector<8x512xf32>
    %16 = arith.addf %15, %14 : vector<8x512xf32>
    %17 = arith.divf %15, %16 : vector<8x512xf32>
    %18 = vector.extract_strided_slice %17 {offsets = [0, 0], sizes = [8, 128], strides = [1, 1]} : vector<8x512xf32> to vector<8x128xf32>
    %19 = vector.extract_strided_slice %17 {offsets = [0, 128], sizes = [8, 128], strides = [1, 1]} : vector<8x512xf32> to vector<8x128xf32>
    %20 = vector.extract_strided_slice %17 {offsets = [0, 256], sizes = [8, 128], strides = [1, 1]} : vector<8x512xf32> to vector<8x128xf32>
    %cst_9 = arith.constant 2.000000e+00 : f32
    %21 = vector.broadcast %cst_9 : f32 to vector<8x128xf32>
    %22 = arith.mulf %21, %20 : vector<8x128xf32>
    %cst_10 = arith.constant 1.000000e+00 : f32
    %23 = vector.broadcast %cst_10 : f32 to vector<8x128xf32>
    %24 = arith.subf %22, %23 : vector<8x128xf32>
    %25 = vector.extract_strided_slice %17 {offsets = [0, 384], sizes = [8, 128], strides = [1, 1]} : vector<8x512xf32> to vector<8x128xf32>
    %26 = arith.mulf %19, %4 : vector<8x128xf32>
    %27 = arith.mulf %18, %24 : vector<8x128xf32>
    %28 = arith.addf %26, %27 : vector<8x128xf32>
    %29 = math.tanh %28 : vector<8x128xf32>
    %30 = arith.mulf %25, %29 : vector<8x128xf32>
    %c1_i32 = arith.constant 1 : i32
    %c8_i32_11 = arith.constant 8 : i32
    %31 = arith.muli %c1_i32, %c8_i32_11 : i32
    %32 = tpu.assume_multiple %31, 8 : i32
    %33 = arith.index_cast %32 : i32 to index
    %c0_12 = arith.constant 0 : index
    %34 = vector.load %arg1[%33, %c0_12] : memref<64x512xf32, #tpu.memory_space<vmem>>, vector<8x512xf32>
    %35 = arith.truncf %30 : vector<8x128xf32> to vector<8x128xbf16>
    %c0_13 = arith.constant 0 : index
    %c0_14 = arith.constant 0 : index
    %36 = vector.load %arg2[%c0_13, %c0_14] : memref<128x512xbf16, #tpu.memory_space<vmem>>, vector<128x512xbf16>
    %cst_15 = arith.constant dense<0.000000e+00> : vector<8x512xf32>
    %37 = tpu.matmul %35, %36, %cst_15 {dimension_numbers = #tpu.dot_dimension_numbers<[1], [0], [0], [1], [0, 0, 1, 1], [], []>} : vector<8x128xbf16>, vector<128x512xbf16>, vector<8x512xf32> -> vector<8x512xf32>
    %38 = arith.addf %34, %37 : vector<8x512xf32>
    %39 = arith.negf %38 : vector<8x512xf32>
    %40 = math.exp %39 : vector<8x512xf32>
    %cst_16 = arith.constant 1.000000e+00 : f32
    %41 = vector.broadcast %cst_16 : f32 to vector<8x512xf32>
    %42 = arith.addf %41, %40 : vector<8x512xf32>
    %43 = arith.divf %41, %42 : vector<8x512xf32>
    %44 = vector.extract_strided_slice %43 {offsets = [0, 0], sizes = [8, 128], strides = [1, 1]} : vector<8x512xf32> to vector<8x128xf32>
    %45 = vector.extract_strided_slice %43 {offsets = [0, 128], sizes = [8, 128], strides = [1, 1]} : vector<8x512xf32> to vector<8x128xf32>
    %46 = vector.extract_strided_slice %43 {offsets = [0, 256], sizes = [8, 128], strides = [1, 1]} : vector<8x512xf32> to vector<8x128xf32>
    %cst_17 = arith.constant 2.000000e+00 : f32
    %47 = vector.broadcast %cst_17 : f32 to vector<8x128xf32>
    %48 = arith.mulf %47, %46 : vector<8x128xf32>
    %cst_18 = arith.constant 1.000000e+00 : f32
    %49 = vector.broadcast %cst_18 : f32 to vector<8x128xf32>
    %50 = arith.subf %48, %49 : vector<8x128xf32>
    %51 = vector.extract_strided_slice %43 {offsets = [0, 384], sizes = [8, 128], strides = [1, 1]} : vector<8x512xf32> to vector<8x128xf32>
    %52 = arith.mulf %45, %28 : vector<8x128xf32>
    %53 = arith.mulf %44, %50 : vector<8x128xf32>
    %54 = arith.addf %52, %53 : vector<8x128xf32>
    %55 = math.tanh %54 : vector<8x128xf32>
    %56 = arith.mulf %51, %55 : vector<8x128xf32>
    %c2_i32 = arith.constant 2 : i32
    %c8_i32_19 = arith.constant 8 : i32
    %57 = arith.muli %c2_i32, %c8_i32_19 : i32
    %58 = tpu.assume_multiple %57, 8 : i32
    %59 = arith.index_cast %58 : i32 to index
    %c0_20 = arith.constant 0 : index
    %60 = vector.load %arg1[%59, %c0_20] : memref<64x512xf32, #tpu.memory_space<vmem>>, vector<8x512xf32>
    %61 = arith.truncf %56 : vector<8x128xf32> to vector<8x128xbf16>
    %c0_21 = arith.constant 0 : index
    %c0_22 = arith.constant 0 : index
    %62 = vector.load %arg2[%c0_21, %c0_22] : memref<128x512xbf16, #tpu.memory_space<vmem>>, vector<128x512xbf16>
    %cst_23 = arith.constant dense<0.000000e+00> : vector<8x512xf32>
    %63 = tpu.matmul %61, %62, %cst_23 {dimension_numbers = #tpu.dot_dimension_numbers<[1], [0], [0], [1], [0, 0, 1, 1], [], []>} : vector<8x128xbf16>, vector<128x512xbf16>, vector<8x512xf32> -> vector<8x512xf32>
    %64 = arith.addf %60, %63 : vector<8x512xf32>
    %65 = arith.negf %64 : vector<8x512xf32>
    %66 = math.exp %65 : vector<8x512xf32>
    %cst_24 = arith.constant 1.000000e+00 : f32
    %67 = vector.broadcast %cst_24 : f32 to vector<8x512xf32>
    %68 = arith.addf %67, %66 : vector<8x512xf32>
    %69 = arith.divf %67, %68 : vector<8x512xf32>
    %70 = vector.extract_strided_slice %69 {offsets = [0, 0], sizes = [8, 128], strides = [1, 1]} : vector<8x512xf32> to vector<8x128xf32>
    %71 = vector.extract_strided_slice %69 {offsets = [0, 128], sizes = [8, 128], strides = [1, 1]} : vector<8x512xf32> to vector<8x128xf32>
    %72 = vector.extract_strided_slice %69 {offsets = [0, 256], sizes = [8, 128], strides = [1, 1]} : vector<8x512xf32> to vector<8x128xf32>
    %cst_25 = arith.constant 2.000000e+00 : f32
    %73 = vector.broadcast %cst_25 : f32 to vector<8x128xf32>
    %74 = arith.mulf %73, %72 : vector<8x128xf32>
    %cst_26 = arith.constant 1.000000e+00 : f32
    %75 = vector.broadcast %cst_26 : f32 to vector<8x128xf32>
    %76 = arith.subf %74, %75 : vector<8x128xf32>
    %77 = vector.extract_strided_slice %69 {offsets = [0, 384], sizes = [8, 128], strides = [1, 1]} : vector<8x512xf32> to vector<8x128xf32>
    %78 = arith.mulf %71, %54 : vector<8x128xf32>
    %79 = arith.mulf %70, %76 : vector<8x128xf32>
    %80 = arith.addf %78, %79 : vector<8x128xf32>
    %81 = math.tanh %80 : vector<8x128xf32>
    %82 = arith.mulf %77, %81 : vector<8x128xf32>
    %c3_i32 = arith.constant 3 : i32
    %c8_i32_27 = arith.constant 8 : i32
    %83 = arith.muli %c3_i32, %c8_i32_27 : i32
    %84 = tpu.assume_multiple %83, 8 : i32
    %85 = arith.index_cast %84 : i32 to index
    %c0_28 = arith.constant 0 : index
    %86 = vector.load %arg1[%85, %c0_28] : memref<64x512xf32, #tpu.memory_space<vmem>>, vector<8x512xf32>
    %87 = arith.truncf %82 : vector<8x128xf32> to vector<8x128xbf16>
    %c0_29 = arith.constant 0 : index
    %c0_30 = arith.constant 0 : index
    %88 = vector.load %arg2[%c0_29, %c0_30] : memref<128x512xbf16, #tpu.memory_space<vmem>>, vector<128x512xbf16>
    %cst_31 = arith.constant dense<0.000000e+00> : vector<8x512xf32>
    %89 = tpu.matmul %87, %88, %cst_31 {dimension_numbers = #tpu.dot_dimension_numbers<[1], [0], [0], [1], [0, 0, 1, 1], [], []>} : vector<8x128xbf16>, vector<128x512xbf16>, vector<8x512xf32> -> vector<8x512xf32>
    %90 = arith.addf %86, %89 : vector<8x512xf32>
    %91 = arith.negf %90 : vector<8x512xf32>
    %92 = math.exp %91 : vector<8x512xf32>
    %cst_32 = arith.constant 1.000000e+00 : f32
    %93 = vector.broadcast %cst_32 : f32 to vector<8x512xf32>
    %94 = arith.addf %93, %92 : vector<8x512xf32>
    %95 = arith.divf %93, %94 : vector<8x512xf32>
    %96 = vector.extract_strided_slice %95 {offsets = [0, 0], sizes = [8, 128], strides = [1, 1]} : vector<8x512xf32> to vector<8x128xf32>
    %97 = vector.extract_strided_slice %95 {offsets = [0, 128], sizes = [8, 128], strides = [1, 1]} : vector<8x512xf32> to vector<8x128xf32>
    %98 = vector.extract_strided_slice %95 {offsets = [0, 256], sizes = [8, 128], strides = [1, 1]} : vector<8x512xf32> to vector<8x128xf32>
    %cst_33 = arith.constant 2.000000e+00 : f32
    %99 = vector.broadcast %cst_33 : f32 to vector<8x128xf32>
    %100 = arith.mulf %99, %98 : vector<8x128xf32>
    %cst_34 = arith.constant 1.000000e+00 : f32
    %101 = vector.broadcast %cst_34 : f32 to vector<8x128xf32>
    %102 = arith.subf %100, %101 : vector<8x128xf32>
    %103 = vector.extract_strided_slice %95 {offsets = [0, 384], sizes = [8, 128], strides = [1, 1]} : vector<8x512xf32> to vector<8x128xf32>
    %104 = arith.mulf %97, %80 : vector<8x128xf32>
    %105 = arith.mulf %96, %102 : vector<8x128xf32>
    %106 = arith.addf %104, %105 : vector<8x128xf32>
    %107 = math.tanh %106 : vector<8x128xf32>
    %108 = arith.mulf %103, %107 : vector<8x128xf32>
    %c4_i32 = arith.constant 4 : i32
    %c8_i32_35 = arith.constant 8 : i32
    %109 = arith.muli %c4_i32, %c8_i32_35 : i32
    %110 = tpu.assume_multiple %109, 8 : i32
    %111 = arith.index_cast %110 : i32 to index
    %c0_36 = arith.constant 0 : index
    %112 = vector.load %arg1[%111, %c0_36] : memref<64x512xf32, #tpu.memory_space<vmem>>, vector<8x512xf32>
    %113 = arith.truncf %108 : vector<8x128xf32> to vector<8x128xbf16>
    %c0_37 = arith.constant 0 : index
    %c0_38 = arith.constant 0 : index
    %114 = vector.load %arg2[%c0_37, %c0_38] : memref<128x512xbf16, #tpu.memory_space<vmem>>, vector<128x512xbf16>
    %cst_39 = arith.constant dense<0.000000e+00> : vector<8x512xf32>
    %115 = tpu.matmul %113, %114, %cst_39 {dimension_numbers = #tpu.dot_dimension_numbers<[1], [0], [0], [1], [0, 0, 1, 1], [], []>} : vector<8x128xbf16>, vector<128x512xbf16>, vector<8x512xf32> -> vector<8x512xf32>
    %116 = arith.addf %112, %115 : vector<8x512xf32>
    %117 = arith.negf %116 : vector<8x512xf32>
    %118 = math.exp %117 : vector<8x512xf32>
    %cst_40 = arith.constant 1.000000e+00 : f32
    %119 = vector.broadcast %cst_40 : f32 to vector<8x512xf32>
    %120 = arith.addf %119, %118 : vector<8x512xf32>
    %121 = arith.divf %119, %120 : vector<8x512xf32>
    %122 = vector.extract_strided_slice %121 {offsets = [0, 0], sizes = [8, 128], strides = [1, 1]} : vector<8x512xf32> to vector<8x128xf32>
    %123 = vector.extract_strided_slice %121 {offsets = [0, 128], sizes = [8, 128], strides = [1, 1]} : vector<8x512xf32> to vector<8x128xf32>
    %124 = vector.extract_strided_slice %121 {offsets = [0, 256], sizes = [8, 128], strides = [1, 1]} : vector<8x512xf32> to vector<8x128xf32>
    %cst_41 = arith.constant 2.000000e+00 : f32
    %125 = vector.broadcast %cst_41 : f32 to vector<8x128xf32>
    %126 = arith.mulf %125, %124 : vector<8x128xf32>
    %cst_42 = arith.constant 1.000000e+00 : f32
    %127 = vector.broadcast %cst_42 : f32 to vector<8x128xf32>
    %128 = arith.subf %126, %127 : vector<8x128xf32>
    %129 = vector.extract_strided_slice %121 {offsets = [0, 384], sizes = [8, 128], strides = [1, 1]} : vector<8x512xf32> to vector<8x128xf32>
    %130 = arith.mulf %123, %106 : vector<8x128xf32>
    %131 = arith.mulf %122, %128 : vector<8x128xf32>
    %132 = arith.addf %130, %131 : vector<8x128xf32>
    %133 = math.tanh %132 : vector<8x128xf32>
    %134 = arith.mulf %129, %133 : vector<8x128xf32>
    %c5_i32 = arith.constant 5 : i32
    %c8_i32_43 = arith.constant 8 : i32
    %135 = arith.muli %c5_i32, %c8_i32_43 : i32
    %136 = tpu.assume_multiple %135, 8 : i32
    %137 = arith.index_cast %136 : i32 to index
    %c0_44 = arith.constant 0 : index
    %138 = vector.load %arg1[%137, %c0_44] : memref<64x512xf32, #tpu.memory_space<vmem>>, vector<8x512xf32>
    %139 = arith.truncf %134 : vector<8x128xf32> to vector<8x128xbf16>
    %c0_45 = arith.constant 0 : index
    %c0_46 = arith.constant 0 : index
    %140 = vector.load %arg2[%c0_45, %c0_46] : memref<128x512xbf16, #tpu.memory_space<vmem>>, vector<128x512xbf16>
    %cst_47 = arith.constant dense<0.000000e+00> : vector<8x512xf32>
    %141 = tpu.matmul %139, %140, %cst_47 {dimension_numbers = #tpu.dot_dimension_numbers<[1], [0], [0], [1], [0, 0, 1, 1], [], []>} : vector<8x128xbf16>, vector<128x512xbf16>, vector<8x512xf32> -> vector<8x512xf32>
    %142 = arith.addf %138, %141 : vector<8x512xf32>
    %143 = arith.negf %142 : vector<8x512xf32>
    %144 = math.exp %143 : vector<8x512xf32>
    %cst_48 = arith.constant 1.000000e+00 : f32
    %145 = vector.broadcast %cst_48 : f32 to vector<8x512xf32>
    %146 = arith.addf %145, %144 : vector<8x512xf32>
    %147 = arith.divf %145, %146 : vector<8x512xf32>
    %148 = vector.extract_strided_slice %147 {offsets = [0, 0], sizes = [8, 128], strides = [1, 1]} : vector<8x512xf32> to vector<8x128xf32>
    %149 = vector.extract_strided_slice %147 {offsets = [0, 128], sizes = [8, 128], strides = [1, 1]} : vector<8x512xf32> to vector<8x128xf32>
    %150 = vector.extract_strided_slice %147 {offsets = [0, 256], sizes = [8, 128], strides = [1, 1]} : vector<8x512xf32> to vector<8x128xf32>
    %cst_49 = arith.constant 2.000000e+00 : f32
    %151 = vector.broadcast %cst_49 : f32 to vector<8x128xf32>
    %152 = arith.mulf %151, %150 : vector<8x128xf32>
    %cst_50 = arith.constant 1.000000e+00 : f32
    %153 = vector.broadcast %cst_50 : f32 to vector<8x128xf32>
    %154 = arith.subf %152, %153 : vector<8x128xf32>
    %155 = vector.extract_strided_slice %147 {offsets = [0, 384], sizes = [8, 128], strides = [1, 1]} : vector<8x512xf32> to vector<8x128xf32>
    %156 = arith.mulf %149, %132 : vector<8x128xf32>
    %157 = arith.mulf %148, %154 : vector<8x128xf32>
    %158 = arith.addf %156, %157 : vector<8x128xf32>
    %159 = math.tanh %158 : vector<8x128xf32>
    %160 = arith.mulf %155, %159 : vector<8x128xf32>
    %c6_i32 = arith.constant 6 : i32
    %c8_i32_51 = arith.constant 8 : i32
    %161 = arith.muli %c6_i32, %c8_i32_51 : i32
    %162 = tpu.assume_multiple %161, 8 : i32
    %163 = arith.index_cast %162 : i32 to index
    %c0_52 = arith.constant 0 : index
    %164 = vector.load %arg1[%163, %c0_52] : memref<64x512xf32, #tpu.memory_space<vmem>>, vector<8x512xf32>
    %165 = arith.truncf %160 : vector<8x128xf32> to vector<8x128xbf16>
    %c0_53 = arith.constant 0 : index
    %c0_54 = arith.constant 0 : index
    %166 = vector.load %arg2[%c0_53, %c0_54] : memref<128x512xbf16, #tpu.memory_space<vmem>>, vector<128x512xbf16>
    %cst_55 = arith.constant dense<0.000000e+00> : vector<8x512xf32>
    %167 = tpu.matmul %165, %166, %cst_55 {dimension_numbers = #tpu.dot_dimension_numbers<[1], [0], [0], [1], [0, 0, 1, 1], [], []>} : vector<8x128xbf16>, vector<128x512xbf16>, vector<8x512xf32> -> vector<8x512xf32>
    %168 = arith.addf %164, %167 : vector<8x512xf32>
    %169 = arith.negf %168 : vector<8x512xf32>
    %170 = math.exp %169 : vector<8x512xf32>
    %cst_56 = arith.constant 1.000000e+00 : f32
    %171 = vector.broadcast %cst_56 : f32 to vector<8x512xf32>
    %172 = arith.addf %171, %170 : vector<8x512xf32>
    %173 = arith.divf %171, %172 : vector<8x512xf32>
    %174 = vector.extract_strided_slice %173 {offsets = [0, 0], sizes = [8, 128], strides = [1, 1]} : vector<8x512xf32> to vector<8x128xf32>
    %175 = vector.extract_strided_slice %173 {offsets = [0, 128], sizes = [8, 128], strides = [1, 1]} : vector<8x512xf32> to vector<8x128xf32>
    %176 = vector.extract_strided_slice %173 {offsets = [0, 256], sizes = [8, 128], strides = [1, 1]} : vector<8x512xf32> to vector<8x128xf32>
    %cst_57 = arith.constant 2.000000e+00 : f32
    %177 = vector.broadcast %cst_57 : f32 to vector<8x128xf32>
    %178 = arith.mulf %177, %176 : vector<8x128xf32>
    %cst_58 = arith.constant 1.000000e+00 : f32
    %179 = vector.broadcast %cst_58 : f32 to vector<8x128xf32>
    %180 = arith.subf %178, %179 : vector<8x128xf32>
    %181 = vector.extract_strided_slice %173 {offsets = [0, 384], sizes = [8, 128], strides = [1, 1]} : vector<8x512xf32> to vector<8x128xf32>
    %182 = arith.mulf %175, %158 : vector<8x128xf32>
    %183 = arith.mulf %174, %180 : vector<8x128xf32>
    %184 = arith.addf %182, %183 : vector<8x128xf32>
    %185 = math.tanh %184 : vector<8x128xf32>
    %186 = arith.mulf %181, %185 : vector<8x128xf32>
    %c7_i32 = arith.constant 7 : i32
    %c8_i32_59 = arith.constant 8 : i32
    %187 = arith.muli %c7_i32, %c8_i32_59 : i32
    %188 = tpu.assume_multiple %187, 8 : i32
    %189 = arith.index_cast %188 : i32 to index
    %c0_60 = arith.constant 0 : index
    %190 = vector.load %arg1[%189, %c0_60] : memref<64x512xf32, #tpu.memory_space<vmem>>, vector<8x512xf32>
    %191 = arith.truncf %186 : vector<8x128xf32> to vector<8x128xbf16>
    %c0_61 = arith.constant 0 : index
    %c0_62 = arith.constant 0 : index
    %192 = vector.load %arg2[%c0_61, %c0_62] : memref<128x512xbf16, #tpu.memory_space<vmem>>, vector<128x512xbf16>
    %cst_63 = arith.constant dense<0.000000e+00> : vector<8x512xf32>
    %193 = tpu.matmul %191, %192, %cst_63 {dimension_numbers = #tpu.dot_dimension_numbers<[1], [0], [0], [1], [0, 0, 1, 1], [], []>} : vector<8x128xbf16>, vector<128x512xbf16>, vector<8x512xf32> -> vector<8x512xf32>
    %194 = arith.addf %190, %193 : vector<8x512xf32>
    %195 = arith.negf %194 : vector<8x512xf32>
    %196 = math.exp %195 : vector<8x512xf32>
    %cst_64 = arith.constant 1.000000e+00 : f32
    %197 = vector.broadcast %cst_64 : f32 to vector<8x512xf32>
    %198 = arith.addf %197, %196 : vector<8x512xf32>
    %199 = arith.divf %197, %198 : vector<8x512xf32>
    %200 = vector.extract_strided_slice %199 {offsets = [0, 0], sizes = [8, 128], strides = [1, 1]} : vector<8x512xf32> to vector<8x128xf32>
    %201 = vector.extract_strided_slice %199 {offsets = [0, 128], sizes = [8, 128], strides = [1, 1]} : vector<8x512xf32> to vector<8x128xf32>
    %202 = vector.extract_strided_slice %199 {offsets = [0, 256], sizes = [8, 128], strides = [1, 1]} : vector<8x512xf32> to vector<8x128xf32>
    %cst_65 = arith.constant 2.000000e+00 : f32
    %203 = vector.broadcast %cst_65 : f32 to vector<8x128xf32>
    %204 = arith.mulf %203, %202 : vector<8x128xf32>
    %cst_66 = arith.constant 1.000000e+00 : f32
    %205 = vector.broadcast %cst_66 : f32 to vector<8x128xf32>
    %206 = arith.subf %204, %205 : vector<8x128xf32>
    %207 = vector.extract_strided_slice %199 {offsets = [0, 384], sizes = [8, 128], strides = [1, 1]} : vector<8x512xf32> to vector<8x128xf32>
    %208 = arith.mulf %201, %184 : vector<8x128xf32>
    %209 = arith.mulf %200, %206 : vector<8x128xf32>
    %210 = arith.addf %208, %209 : vector<8x128xf32>
    %211 = math.tanh %210 : vector<8x128xf32>
    %212 = arith.mulf %207, %211 : vector<8x128xf32>
    %c8_i32_67 = arith.constant 8 : i32
    %c0_68 = arith.constant 0 : index
    %c0_69 = arith.constant 0 : index
    %213 = vector.load %arg6[%c0_68, %c0_69] : memref<8x128xf32, #tpu.memory_space<vmem>>, vector<8x128xf32>
    tpu.vector_store %arg6[%c0_68, %c0_69], %212 {strides = array<i32>} : memref<8x128xf32, #tpu.memory_space<vmem>>, vector<8x128xf32>,
    %c0_70 = arith.constant 0 : index
    %c0_71 = arith.constant 0 : index
    %214 = vector.load %arg7[%c0_70, %c0_71] : memref<8x128xf32, #tpu.memory_space<vmem>>, vector<8x128xf32>
    tpu.vector_store %arg7[%c0_70, %c0_71], %210 {strides = array<i32>} : memref<8x128xf32, #tpu.memory_space<vmem>>, vector<8x128xf32>,
    %c0_i32_72 = arith.constant 0 : i32
    %215 = arith.cmpi eq, %arg0, %c0_i32_72 : i32
    %216 = arith.extui %215 : i1 to i32
    %c0_i32_73 = arith.constant 0 : i32
    %217 = arith.cmpi ne, %216, %c0_i32_73 : i32
    scf.if %217 {
      %c0_74 = arith.constant 0 : index
      %c0_75 = arith.constant 0 : index
      %218 = vector.load %arg3[%c0_74, %c0_75] : memref<128x128xf32, #tpu.memory_space<vmem>>, vector<128x128xf32>
      %cst_76 = arith.constant dense<0.000000e+00> : vector<8x128xf32>
      %219 = tpu.matmul %212, %218, %cst_76 {dimension_numbers = #tpu.dot_dimension_numbers<[1], [0], [0], [1], [0, 0, 1, 1], [], []>} : vector<8x128xf32>, vector<128x128xf32>, vector<8x128xf32> -> vector<8x128xf32>
      %c0_77 = arith.constant 0 : index
      %c0_78 = arith.constant 0 : index
      %220 = vector.load %arg4[%c0_77, %c0_78] : memref<1x128xf32, #tpu.memory_space<vmem>>, vector<1x128xf32>
      %221 = vector.broadcast %220 : vector<1x128xf32> to vector<8x128xf32>
      %222 = arith.addf %219, %221 : vector<8x128xf32>
      %c0_79 = arith.constant 0 : index
      %c0_80 = arith.constant 0 : index
      %223 = vector.load %arg5[%c0_79, %c0_80] : memref<8x128xf32, #tpu.memory_space<vmem>>, vector<8x128xf32>
      tpu.vector_store %arg5[%c0_79, %c0_80], %222 {strides = array<i32>} : memref<8x128xf32, #tpu.memory_space<vmem>>, vector<8x128xf32>,
    } else {
    }
    return
  }
  func.func @transform_0(%arg0: i32) -> (i32, i32) {
    %c0_i32 = arith.constant 0 : i32
    %c0_i32_0 = arith.constant 0 : i32
    return %arg0, %c0_i32 : i32, i32
  }
  func.func @transform_1(%arg0: i32) -> (i32, i32) {
    %c0_i32 = arith.constant 0 : i32
    %c0_i32_0 = arith.constant 0 : i32
    %c0_i32_1 = arith.constant 0 : i32
    return %c0_i32, %c0_i32_0 : i32, i32
  }
  func.func @transform_2(%arg0: i32) -> (i32, i32) {
    %c0_i32 = arith.constant 0 : i32
    %c0_i32_0 = arith.constant 0 : i32
    %c0_i32_1 = arith.constant 0 : i32
    return %c0_i32, %c0_i32_0 : i32, i32
  }
  func.func @transform_3(%arg0: i32) -> (i32, i32) {
    %c0_i32 = arith.constant 0 : i32
    %c0_i32_0 = arith.constant 0 : i32
    %c0_i32_1 = arith.constant 0 : i32
    return %c0_i32, %c0_i32_0 : i32, i32
  }
  func.func @transform_4(%arg0: i32) -> (i32, i32) {
    %c0_i32 = arith.constant 0 : i32
    %c0_i32_0 = arith.constant 0 : i32
    %c0_i32_1 = arith.constant 0 : i32
    return %c0_i32, %c0_i32_0 : i32, i32
  }
}

</mosaic_0001>

<llo_original>
// kernel: tpu_custom_call.1
$region0: #{tpu_custom_call.1}
  #allocation0 [shape = 'u32[]', space=smem, size = 0x4, offset = 0x4, fixed_abs, tag = 'smem constant byte address 0x4 - core index']
  #allocation1 [shape = 'u32[144,128]{1,0:T(1,128)}', space=vmem, size = 0x12000, scoped, tag = 'internal scratch']
  #allocation2 [shape = 'f32[8,128]{1,0:T(8,128)}', space=vmem, size = 0x1000, scoped, tag = 'scratch operand']
  #allocation3 [shape = 'f32[8,128]{1,0:T(8,128)}', space=vmem, size = 0x1000, scoped, tag = 'scratch operand']
  %s0 = inlined_call_operand.hbm [shape: f32[64,512], index: 0, kind: input, shape index: {}]
  %s1 = inlined_call_operand.hbm [shape: bf16[128,512], index: 1, kind: input, shape index: {}]
  %s2 = inlined_call_operand.hbm [shape: f32[128,128], index: 2, kind: input, shape index: {}]
  %s3 = inlined_call_operand.vmem [shape: f32[1,128], index: 3, kind: input, shape index: {}]
  %s4 = inlined_call_operand.hbm [shape: f32[8,128], index: 4, kind: output, shape index: {}]
  %s5 = sld [smem:[#allocation0]]
  $region46: #{tpu_custom_call.1} parent=0
    _
  %s7 = ssub.s32 1, %s5
  %s8 = scalar_select 0, %s7, %s5
  $region1: #{tpu_custom_call.1} parent=0
    #allocation4 [shape = 'u8[131072]{0}', space=vmem, size = 0x20000, scoped, tag = 'input window, operand 0, single buffered']
    #allocation5 [shape = 's32[1]{0}', space=sflag, size = 0x4, scoped, tag = 'scoped memory for tpu_custom_call.1']
    #allocation6 [shape = 's32[1]{0}', space=sflag, size = 0x4, scoped, tag = 'scoped memory for tpu_custom_call.1']
    #allocation7 [shape = 'u8[131072]{0}', space=vmem, size = 0x20000, scoped, tag = 'input window, operand 1, single buffered']
    #allocation8 [shape = 's32[1]{0}', space=sflag, size = 0x4, scoped, tag = 'scoped memory for tpu_custom_call.1']
    #allocation9 [shape = 'u8[65536]{0}', space=vmem, size = 0x10000, scoped, tag = 'input window, operand 2, single buffered']
    #allocation10 [shape = 'u8[4096]{0}', space=vmem, size = 0x1000, scoped, tag = 'output window, operand 0, single buffered']
    %9 = vsyncpa [#allocation5], 0
    %10 = vsyncpa [#allocation8], 0
    %11 = vsyncpa [#allocation6], 0
    // Predicated region
    $region2: #{tpu_custom_call.1} parent=1 // pred_check
      _
    $region3: #{tpu_custom_call.1} parent=1 // pred_check_branch
      %13 = sbr.rel (0) target = $region5
    $region4: #{tpu_custom_call.1} parent=1 // pred_region
      %s15 = ssub.s32 4096, 4096
      %16 = vsyncadd [#allocation5], %s15
      %s17 = sshll.u32 [#allocation4], 4
      %s18 = int_to_ptr.vmem [resolvable:$true] %s17
      %23 = dma.hbm_to_vmem [thread:$0]  %s0, 4096, %s18, [#allocation5], 512, 512, 32
    $region5: #{tpu_custom_call.1} parent=1 // pred_fallthru
      _
    // Predicated region
    $region6: #{tpu_custom_call.1} parent=1 // pred_check
      _
    $region7: #{tpu_custom_call.1} parent=1 // pred_check_branch
      %25 = sbr.rel (0) target = $region9
    $region8: #{tpu_custom_call.1} parent=1 // pred_region
      %s27 = ssub.s32 4096, 4096
      %28 = vsyncadd [#allocation8], %s27
      %s29 = sshll.u32 [#allocation7], 4
      %s30 = int_to_ptr.vmem [resolvable:$true] %s29
      %35 = dma.hbm_to_vmem [thread:$0]  %s1, 4096, %s30, [#allocation8], 256, 256, 16
    $region9: #{tpu_custom_call.1} parent=1 // pred_fallthru
      _
    // Predicated region
    $region10: #{tpu_custom_call.1} parent=1 // pred_check
      _
    $region11: #{tpu_custom_call.1} parent=1 // pred_check_branch
      %37 = sbr.rel (0) target = $region13
    $region12: #{tpu_custom_call.1} parent=1 // pred_region
      %s39 = ssub.s32 2048, 2048
      %40 = vsyncadd [#allocation8], %s39
      %s41 = sshll.u32 [#allocation9], 4
      %s42 = int_to_ptr.vmem [resolvable:$true] %s41
      %47 = dma.hbm_to_vmem [thread:$0]  %s2, 2048, %s42, [#allocation8], 128, 128, 8
    $region13: #{tpu_custom_call.1} parent=1 // pred_fallthru
      _
    // Predicated region
    $region14: #{tpu_custom_call.1} parent=1 // pred_check
      _
    $region15: #{tpu_custom_call.1} parent=1 // pred_check_branch
      %49 = sbr.rel (0) target = $region17
    $region16: #{tpu_custom_call.1} parent=1 // pred_region
      _
    $region17: #{tpu_custom_call.1} parent=1 // pred_fallthru
      _
    // Predicated region
    $region18: #{tpu_custom_call.1} parent=1 // pred_check
      _
    $region19: #{tpu_custom_call.1} parent=1 // pred_check_branch
      %51 = sbr.rel (0) target = $region21
    $region20: #{tpu_custom_call.1} parent=1 // pred_region
      %52 = dma.done [#allocation5], 4096
    $region21: #{tpu_custom_call.1} parent=1 // pred_fallthru
      _
    // Predicated region
    $region22: #{tpu_custom_call.1} parent=1 // pred_check
      _
    $region23: #{tpu_custom_call.1} parent=1 // pred_check_branch
      %54 = sbr.rel (0) target = $region25
    $region24: #{tpu_custom_call.1} parent=1 // pred_region
      %55 = dma.done [#allocation8], 4096
    $region25: #{tpu_custom_call.1} parent=1 // pred_fallthru
      _
    // Predicated region
    $region26: #{tpu_custom_call.1} parent=1 // pred_check
      _
    $region27: #{tpu_custom_call.1} parent=1 // pred_check_branch
      %57 = sbr.rel (0) target = $region29
    $region28: #{tpu_custom_call.1} parent=1 // pred_region
      %58 = dma.done [#allocation8], 2048
    $region29: #{tpu_custom_call.1} parent=1 // pred_fallthru
      _
    %p60 = scmp.eq.s32.totalorder 0, 0
    // Predicated region
    $region30: #{tpu_custom_call.1} parent=1 // pred_check
      %p61 = pneg %p60
    $region31: #{tpu_custom_call.1} parent=1 // pred_check_branch
      %63 = sbr.rel (%p61) target = $region33
    $region32: #{tpu_custom_call.1} parent=1 // pred_region
      %64 = vst [vmem:[#allocation2] sm:$0xff] 0.0
      %65 = vst [vmem:[#allocation3] sm:$0xff] 0.0
    $region33: #{tpu_custom_call.1} parent=1 // pred_fallthru
      _
    %v66 = vld [vmem:[#allocation2] sm:$0xff]
    %v67 = vld [vmem:[#allocation3] sm:$0xff]
    %s68 = smul.u32 0, 4
    %s69 = smul.addr %s68, 8
    %s70 = scalar_lea.vmem [#allocation4], %s69
    %v71 = vld [vmem:[%s70] sm:$0xff]
    %v72 = vld [vmem:[%s70 + $0x8] sm:$0xff]
    %v73 = vld [vmem:[%s70 + $0x10] sm:$0xff]
    %v74 = vld [vmem:[%s70 + $0x18] sm:$0xff]
    %v75 = vpack.c.bf16 %v66, %v66
    %v76 = vld [vmem:[#allocation7] sm:$0xff]
    %v77 = vld [vmem:[#allocation7 + $0x8] sm:$0xff]
    %v78 = vld [vmem:[#allocation7 + $0x10] sm:$0xff]
    %v79 = vld [vmem:[#allocation7 + $0x18] sm:$0xff]
    %v80 = vld [vmem:[#allocation7 + $0x20] sm:$0xff]
    %v81 = vld [vmem:[#allocation7 + $0x28] sm:$0xff]
    %v82 = vld [vmem:[#allocation7 + $0x30] sm:$0xff]
    %v83 = vld [vmem:[#allocation7 + $0x38] sm:$0xff]
    %v84 = vld [vmem:[#allocation7 + $0x40] sm:$0xff]
    %v85 = vld [vmem:[#allocation7 + $0x48] sm:$0xff]
    %v86 = vld [vmem:[#allocation7 + $0x50] sm:$0xff]
    %v87 = vld [vmem:[#allocation7 + $0x58] sm:$0xff]
    %v88 = vld [vmem:[#allocation7 + $0x60] sm:$0xff]
    %v89 = vld [vmem:[#allocation7 + $0x68] sm:$0xff]
    %v90 = vld [vmem:[#allocation7 + $0x70] sm:$0xff]
    %v91 = vld [vmem:[#allocation7 + $0x78] sm:$0xff]
    %v92 = vld [vmem:[#allocation7 + $0x80] sm:$0xff]
    %v93 = vld [vmem:[#allocation7 + $0x88] sm:$0xff]
    %v94 = vld [vmem:[#allocation7 + $0x90] sm:$0xff]
    %v95 = vld [vmem:[#allocation7 + $0x98] sm:$0xff]
    %v96 = vld [vmem:[#allocation7 + $0xa0] sm:$0xff]
    %v97 = vld [vmem:[#allocation7 + $0xa8] sm:$0xff]
    %v98 = vld [vmem:[#allocation7 + $0xb0] sm:$0xff]
    %v99 = vld [vmem:[#allocation7 + $0xb8] sm:$0xff]
    %v100 = vld [vmem:[#allocation7 + $0xc0] sm:$0xff]
    %v101 = vld [vmem:[#allocation7 + $0xc8] sm:$0xff]
    %v102 = vld [vmem:[#allocation7 + $0xd0] sm:$0xff]
    %v103 = vld [vmem:[#allocation7 + $0xd8] sm:$0xff]
    %v104 = vld [vmem:[#allocation7 + $0xe0] sm:$0xff]
    %v105 = vld [vmem:[#allocation7 + $0xe8] sm:$0xff]
    %v106 = vld [vmem:[#allocation7 + $0xf0] sm:$0xff]
    %v107 = vld [vmem:[#allocation7 + $0xf8] sm:$0xff]
    %v140 = vunpack.c.l.b16 %v76
    %v141 = vunpack.c.h.b16 %v76
    %v142 = vunpack.c.l.b16 %v77
    %v143 = vunpack.c.h.b16 %v77
    %v144 = vunpack.c.l.b16 %v78
    %v145 = vunpack.c.h.b16 %v78
    %v146 = vunpack.c.l.b16 %v79
    %v147 = vunpack.c.h.b16 %v79
    %v148 = vunpack.c.l.b16 %v80
    %v149 = vunpack.c.h.b16 %v80
    %v150 = vunpack.c.l.b16 %v81
    %v151 = vunpack.c.h.b16 %v81
    %v152 = vunpack.c.l.b16 %v82
    %v153 = vunpack.c.h.b16 %v82
    %v154 = vunpack.c.l.b16 %v83
    %v155 = vunpack.c.h.b16 %v83
    %v156 = vunpack.c.l.b16 %v84
    %v157 = vunpack.c.h.b16 %v84
    %v158 = vunpack.c.l.b16 %v85
    %v159 = vunpack.c.h.b16 %v85
    %v160 = vunpack.c.l.b16 %v86
    %v161 = vunpack.c.h.b16 %v86
    %v162 = vunpack.c.l.b16 %v87
    %v163 = vunpack.c.h.b16 %v87
    %v164 = vunpack.c.l.b16 %v88
    %v165 = vunpack.c.h.b16 %v88
    %v166 = vunpack.c.l.b16 %v89
    %v167 = vunpack.c.h.b16 %v89
    %v168 = vunpack.c.l.b16 %v90
    %v169 = vunpack.c.h.b16 %v90
    %v170 = vunpack.c.l.b16 %v91
    %v171 = vunpack.c.h.b16 %v91
    %v172 = vunpack.c.l.b16 %v92
    %v173 = vunpack.c.h.b16 %v92
    %v174 = vunpack.c.l.b16 %v93
    %v175 = vunpack.c.h.b16 %v93
    %v176 = vunpack.c.l.b16 %v94
    %v177 = vunpack.c.h.b16 %v94
    %v178 = vunpack.c.l.b16 %v95
    %v179 = vunpack.c.h.b16 %v95
    %v180 = vunpack.c.l.b16 %v96
    %v181 = vunpack.c.h.b16 %v96
    %v182 = vunpack.c.l.b16 %v97
    %v183 = vunpack.c.h.b16 %v97
    %v184 = vunpack.c.l.b16 %v98
    %v185 = vunpack.c.h.b16 %v98
    %v186 = vunpack.c.l.b16 %v99
    %v187 = vunpack.c.h.b16 %v99
    %v188 = vunpack.c.l.b16 %v100
    %v189 = vunpack.c.h.b16 %v100
    %v190 = vunpack.c.l.b16 %v101
    %v191 = vunpack.c.h.b16 %v101
    %v192 = vunpack.c.l.b16 %v102
    %v193 = vunpack.c.h.b16 %v102
    %v194 = vunpack.c.l.b16 %v103
    %v195 = vunpack.c.h.b16 %v103
    %v196 = vunpack.c.l.b16 %v104
    %v197 = vunpack.c.h.b16 %v104
    %v198 = vunpack.c.l.b16 %v105
    %v199 = vunpack.c.h.b16 %v105
    %v200 = vunpack.c.l.b16 %v106
    %v201 = vunpack.c.h.b16 %v106
    %v202 = vunpack.c.l.b16 %v107
    %v203 = vunpack.c.h.b16 %v107
    %v204 = vpack.c.b16 %v144, %v140
    %v205 = vpack.c.b16 %v145, %v141
    %v206 = vpack.c.b16 %v146, %v142
    %v207 = vpack.c.b16 %v147, %v143
    %v208 = vpack.c.b16 %v152, %v148
    %v209 = vpack.c.b16 %v153, %v149
    %v210 = vpack.c.b16 %v154, %v150
    %v211 = vpack.c.b16 %v155, %v151
    %v212 = vpack.c.b16 %v160, %v156
    %v213 = vpack.c.b16 %v161, %v157
    %v214 = vpack.c.b16 %v162, %v158
    %v215 = vpack.c.b16 %v163, %v159
    %v216 = vpack.c.b16 %v168, %v164
    %v217 = vpack.c.b16 %v169, %v165
    %v218 = vpack.c.b16 %v170, %v166
    %v219 = vpack.c.b16 %v171, %v167
    %v220 = vpack.c.b16 %v176, %v172
    %v221 = vpack.c.b16 %v177, %v173
    %v222 = vpack.c.b16 %v178, %v174
    %v223 = vpack.c.b16 %v179, %v175
    %v224 = vpack.c.b16 %v184, %v180
    %v225 = vpack.c.b16 %v185, %v181
    %v226 = vpack.c.b16 %v186, %v182
    %v227 = vpack.c.b16 %v187, %v183
    %v228 = vpack.c.b16 %v192, %v188
    %v229 = vpack.c.b16 %v193, %v189
    %v230 = vpack.c.b16 %v194, %v190
    %v231 = vpack.c.b16 %v195, %v191
    %v232 = vpack.c.b16 %v200, %v196
    %v233 = vpack.c.b16 %v201, %v197
    %v234 = vpack.c.b16 %v202, %v198
    %v235 = vpack.c.b16 %v203, %v199
    %268 = vmatprep.subr.bf16.mxu0 %v205
    %269 = vmatpush1.bf16.msra.mxu0 %v204
    %270 = vmatprep.subr.bf16.mxu0 %v209
    %271 = vmatpush1.bf16.msra.mxu0 %v208
    %272 = vmatprep.subr.bf16.mxu0 %v213
    %273 = vmatpush1.bf16.msra.mxu0 %v212
    %274 = vmatprep.subr.bf16.mxu0 %v217
    %275 = vmatpush1.bf16.msra.mxu0 %v216
    %276 = vmatprep.subr.bf16.mxu0 %v221
    %277 = vmatpush1.bf16.msra.mxu0 %v220
    %278 = vmatprep.subr.bf16.mxu0 %v225
    %279 = vmatpush1.bf16.msra.mxu0 %v224
    %280 = vmatprep.subr.bf16.mxu0 %v229
    %281 = vmatpush1.bf16.msra.mxu0 %v228
    %282 = vmatprep.subr.bf16.mxu0 %v233
    %283 = vmatpush1.bf16.msra.mxu0 %v232
    %284 = vmatprep.subr.bf16.mxu0 0
    %285 = vmatpush1.bf16.msra.mxu0 0
    %286 = vmatprep.subr.bf16.mxu0 0
    %287 = vmatpush1.bf16.msra.mxu0 0
    %288 = vmatprep.subr.bf16.mxu0 0
    %289 = vmatpush1.bf16.msra.mxu0 0
    %290 = vmatprep.subr.bf16.mxu0 0
    %291 = vmatpush1.bf16.msra.mxu0 0
    %292 = vmatprep.subr.bf16.mxu0 0
    %293 = vmatpush1.bf16.msra.mxu0 0
    %294 = vmatprep.subr.bf16.mxu0 0
    %295 = vmatpush1.bf16.msra.mxu0 0
    %296 = vmatprep.subr.bf16.mxu0 0
    %297 = vmatpush1.bf16.msra.mxu0 0
    %298 = vmatprep.subr.bf16.mxu0 0
    %299 = vmatpush1.bf16.msra.mxu0 0
    %300 = vmatprep.mubr.bf16.mxu0 0
    %301 = vmatmul.mubr.bf16.gmra.mrb[0].mxu0 %v75
    %v302 = vpop.f32.mrb[0].mxu0
    %v303 = vadd.f32 0.0, %v302
    %v304 = vpop.f32.mrb[0].mxu0
    %v305 = vadd.f32 0.0, %v304
    %v306 = vpop.f32.mrb[0].mxu0
    %v307 = vpop.f32.mrb[0].mxu0
    %308 = vdwg.mxu0
    %309 = vmatprep.subr.bf16.mxu0 %v207
    %310 = vmatpush1.bf16.msra.mxu0 %v206
    %311 = vmatprep.subr.bf16.mxu0 %v211
    %312 = vmatpush1.bf16.msra.mxu0 %v210
    %313 = vmatprep.subr.bf16.mxu0 %v215
    %314 = vmatpush1.bf16.msra.mxu0 %v214
    %315 = vmatprep.subr.bf16.mxu0 %v219
    %316 = vmatpush1.bf16.msra.mxu0 %v218
    %317 = vmatprep.subr.bf16.mxu0 %v223
    %318 = vmatpush1.bf16.msra.mxu0 %v222
    %319 = vmatprep.subr.bf16.mxu0 %v227
    %320 = vmatpush1.bf16.msra.mxu0 %v226
    %321 = vmatprep.subr.bf16.mxu0 %v231
    %322 = vmatpush1.bf16.msra.mxu0 %v230
    %323 = vmatprep.subr.bf16.mxu0 %v235
    %324 = vmatpush1.bf16.msra.mxu0 %v234
    %325 = vmatprep.subr.bf16.mxu0 0
    %326 = vmatpush1.bf16.msra.mxu0 0
    %327 = vmatprep.subr.bf16.mxu0 0
    %328 = vmatpush1.bf16.msra.mxu0 0
    %329 = vmatprep.subr.bf16.mxu0 0
    %330 = vmatpush1.bf16.msra.mxu0 0
    %331 = vmatprep.subr.bf16.mxu0 0
    %332 = vmatpush1.bf16.msra.mxu0 0
    %333 = vmatprep.subr.bf16.mxu0 0
    %334 = vmatpush1.bf16.msra.mxu0 0
    %335 = vmatprep.subr.bf16.mxu0 0
    %336 = vmatpush1.bf16.msra.mxu0 0
    %337 = vmatprep.subr.bf16.mxu0 0
    %338 = vmatpush1.bf16.msra.mxu0 0
    %339 = vmatprep.subr.bf16.mxu0 0
    %340 = vmatpush1.bf16.msra.mxu0 0
    %341 = vmatprep.mubr.bf16.mxu0 0
    %342 = vmatmul.mubr.bf16.gmra.mrb[0].mxu0 %v75
    %v343 = vpop.f32.mrb[0].mxu0
    %v344 = vadd.f32 0.0, %v343
    %v345 = vpop.f32.mrb[0].mxu0
    %v346 = vadd.f32 0.0, %v345
    %v347 = vpop.f32.mrb[0].mxu0
    %v348 = vpop.f32.mrb[0].mxu0
    %349 = vdwg.mxu0
    %v350 = vadd.f32 %v71, %v303
    %v351 = vadd.f32 %v72, %v305
    %v352 = vadd.f32 %v73, %v344
    %v353 = vadd.f32 %v74, %v346
    %v354 = vxor.u32 %v350, 2147483648
    %v355 = vxor.u32 %v351, 2147483648
    %v356 = vxor.u32 %v352, 2147483648
    %v357 = vxor.u32 %v353, 2147483648
    %v358 = vmul.f32 %v354, 1.442695
    %v359 = vpow.pop %v358
    %v360 = vmul.f32 %v355, 1.442695
    %v361 = vpow.pop %v360
    %v362 = vmul.f32 %v356, 1.442695
    %v363 = vpow.pop %v362
    %v364 = vmul.f32 %v357, 1.442695
    %v365 = vpow.pop %v364
    %v366 = vadd.f32 %v359, 1.0
    %v367 = vadd.f32 %v361, 1.0
    %v368 = vadd.f32 %v363, 1.0
    %v369 = vadd.f32 %v365, 1.0
    %v370 = vrcp.pop %v366
    %v371 = vmul.f32 1.0, %v370
    %v372 = vrcp.pop %v367
    %v373 = vmul.f32 1.0, %v372
    %v374 = vrcp.pop %v368
    %v375 = vmul.f32 1.0, %v374
    %v376 = vrcp.pop %v369
    %v377 = vmul.f32 1.0, %v376
    %v378 = vmul.f32 %v375, 2.0
    %v379 = vsub.f32 %v378, 1.0
    %v380 = vmul.f32 %v373, %v67
    %v381 = vmul.f32 %v371, %v379
    %v382 = vadd.f32 %v380, %v381
    %v383 = vtanh.pop %v382
    %v384 = vmul.f32 %v377, %v383
    %s385 = smul.u32 1, 4
    %s386 = smul.addr %s385, 8
    %s387 = scalar_lea.vmem [#allocation4], %s386
    %v388 = vld [vmem:[%s387] sm:$0xff]
    %v389 = vld [vmem:[%s387 + $0x8] sm:$0xff]
    %v390 = vld [vmem:[%s387 + $0x10] sm:$0xff]
    %v391 = vld [vmem:[%s387 + $0x18] sm:$0xff]
    %v392 = vpack.c.bf16 %v384, %v384
    %393 = vmatprep.subr.bf16.mxu0 %v205
    %394 = vmatpush1.bf16.msra.mxu0 %v204
    %395 = vmatprep.subr.bf16.mxu0 %v209
    %396 = vmatpush1.bf16.msra.mxu0 %v208
    %397 = vmatprep.subr.bf16.mxu0 %v213
    %398 = vmatpush1.bf16.msra.mxu0 %v212
    %399 = vmatprep.subr.bf16.mxu0 %v217
    %400 = vmatpush1.bf16.msra.mxu0 %v216
    %401 = vmatprep.subr.bf16.mxu0 %v221
    %402 = vmatpush1.bf16.msra.mxu0 %v220
    %403 = vmatprep.subr.bf16.mxu0 %v225
    %404 = vmatpush1.bf16.msra.mxu0 %v224
    %405 = vmatprep.subr.bf16.mxu0 %v229
    %406 = vmatpush1.bf16.msra.mxu0 %v228
    %407 = vmatprep.subr.bf16.mxu0 %v233
    %408 = vmatpush1.bf16.msra.mxu0 %v232
    %409 = vmatprep.subr.bf16.mxu0 0
    %410 = vmatpush1.bf16.msra.mxu0 0
    %411 = vmatprep.subr.bf16.mxu0 0
    %412 = vmatpush1.bf16.msra.mxu0 0
    %413 = vmatprep.subr.bf16.mxu0 0
    %414 = vmatpush1.bf16.msra.mxu0 0
    %415 = vmatprep.subr.bf16.mxu0 0
    %416 = vmatpush1.bf16.msra.mxu0 0
    %417 = vmatprep.subr.bf16.mxu0 0
    %418 = vmatpush1.bf16.msra.mxu0 0
    %419 = vmatprep.subr.bf16.mxu0 0
    %420 = vmatpush1.bf16.msra.mxu0 0
    %421 = vmatprep.subr.bf16.mxu0 0
    %422 = vmatpush1.bf16.msra.mxu0 0
    %423 = vmatprep.subr.bf16.mxu0 0
    %424 = vmatpush1.bf16.msra.mxu0 0
    %425 = vmatprep.mubr.bf16.mxu0 0
    %426 = vmatmul.mubr.bf16.gmra.mrb[0].mxu0 %v392
    %v427 = vpop.f32.mrb[0].mxu0
    %v428 = vadd.f32 0.0, %v427
    %v429 = vpop.f32.mrb[0].mxu0
    %v430 = vadd.f32 0.0, %v429
    %v431 = vpop.f32.mrb[0].mxu0
    %v432 = vpop.f32.mrb[0].mxu0
    %433 = vdwg.mxu0
    %434 = vmatprep.subr.bf16.mxu0 %v207
    %435 = vmatpush1.bf16.msra.mxu0 %v206
    %436 = vmatprep.subr.bf16.mxu0 %v211
    %437 = vmatpush1.bf16.msra.mxu0 %v210
    %438 = vmatprep.subr.bf16.mxu0 %v215
    %439 = vmatpush1.bf16.msra.mxu0 %v214
    %440 = vmatprep.subr.bf16.mxu0 %v219
    %441 = vmatpush1.bf16.msra.mxu0 %v218
    %442 = vmatprep.subr.bf16.mxu0 %v223
    %443 = vmatpush1.bf16.msra.mxu0 %v222
    %444 = vmatprep.subr.bf16.mxu0 %v227
    %445 = vmatpush1.bf16.msra.mxu0 %v226
    %446 = vmatprep.subr.bf16.mxu0 %v231
    %447 = vmatpush1.bf16.msra.mxu0 %v230
    %448 = vmatprep.subr.bf16.mxu0 %v235
    %449 = vmatpush1.bf16.msra.mxu0 %v234
    %450 = vmatprep.subr.bf16.mxu0 0
    %451 = vmatpush1.bf16.msra.mxu0 0
    %452 = vmatprep.subr.bf16.mxu0 0
    %453 = vmatpush1.bf16.msra.mxu0 0
    %454 = vmatprep.subr.bf16.mxu0 0
    %455 = vmatpush1.bf16.msra.mxu0 0
    %456 = vmatprep.subr.bf16.mxu0 0
    %457 = vmatpush1.bf16.msra.mxu0 0
    %458 = vmatprep.subr.bf16.mxu0 0
    %459 = vmatpush1.bf16.msra.mxu0 0
    %460 = vmatprep.subr.bf16.mxu0 0
    %461 = vmatpush1.bf16.msra.mxu0 0
    %462 = vmatprep.subr.bf16.mxu0 0
    %463 = vmatpush1.bf16.msra.mxu0 0
    %464 = vmatprep.subr.bf16.mxu0 0
    %465 = vmatpush1.bf16.msra.mxu0 0
    %466 = vmatprep.mubr.bf16.mxu0 0
    %467 = vmatmul.mubr.bf16.gmra.mrb[0].mxu0 %v392
    %v468 = vpop.f32.mrb[0].mxu0
    %v469 = vadd.f32 0.0, %v468
    %v470 = vpop.f32.mrb[0].mxu0
    %v471 = vadd.f32 0.0, %v470
    %v472 = vpop.f32.mrb[0].mxu0
    %v473 = vpop.f32.mrb[0].mxu0
    %474 = vdwg.mxu0
    %v475 = vadd.f32 %v388, %v428
    %v476 = vadd.f32 %v389, %v430
    %v477 = vadd.f32 %v390, %v469
    %v478 = vadd.f32 %v391, %v471
    %v479 = vxor.u32 %v475, 2147483648
    %v480 = vxor.u32 %v476, 2147483648
    %v481 = vxor.u32 %v477, 2147483648
    %v482 = vxor.u32 %v478, 2147483648
    %v483 = vmul.f32 %v479, 1.442695
    %v484 = vpow.pop %v483
    %v485 = vmul.f32 %v480, 1.442695
    %v486 = vpow.pop %v485
    %v487 = vmul.f32 %v481, 1.442695
    %v488 = vpow.pop %v487
    %v489 = vmul.f32 %v482, 1.442695
    %v490 = vpow.pop %v489
    %v491 = vadd.f32 %v484, 1.0
    %v492 = vadd.f32 %v486, 1.0
    %v493 = vadd.f32 %v488, 1.0
    %v494 = vadd.f32 %v490, 1.0
    %v495 = vrcp.pop %v491
    %v496 = vmul.f32 1.0, %v495
    %v497 = vrcp.pop %v492
    %v498 = vmul.f32 1.0, %v497
    %v499 = vrcp.pop %v493
    %v500 = vmul.f32 1.0, %v499
    %v501 = vrcp.pop %v494
    %v502 = vmul.f32 1.0, %v501
    %v503 = vmul.f32 %v500, 2.0
    %v504 = vsub.f32 %v503, 1.0
    %v505 = vmul.f32 %v498, %v382
    %v506 = vmul.f32 %v496, %v504
    %v507 = vadd.f32 %v505, %v506
    %v508 = vtanh.pop %v507
    %v509 = vmul.f32 %v502, %v508
    %s510 = smul.u32 2, 4
    %s511 = smul.addr %s510, 8
    %s512 = scalar_lea.vmem [#allocation4], %s511
    %v513 = vld [vmem:[%s512] sm:$0xff]
    %v514 = vld [vmem:[%s512 + $0x8] sm:$0xff]
    %v515 = vld [vmem:[%s512 + $0x10] sm:$0xff]
    %v516 = vld [vmem:[%s512 + $0x18] sm:$0xff]
    %v517 = vpack.c.bf16 %v509, %v509
    %518 = vmatprep.subr.bf16.mxu0 %v205
    %519 = vmatpush1.bf16.msra.mxu0 %v204
    %520 = vmatprep.subr.bf16.mxu0 %v209
    %521 = vmatpush1.bf16.msra.mxu0 %v208
    %522 = vmatprep.subr.bf16.mxu0 %v213
    %523 = vmatpush1.bf16.msra.mxu0 %v212
    %524 = vmatprep.subr.bf16.mxu0 %v217
    %525 = vmatpush1.bf16.msra.mxu0 %v216
    %526 = vmatprep.subr.bf16.mxu0 %v221
    %527 = vmatpush1.bf16.msra.mxu0 %v220
    %528 = vmatprep.subr.bf16.mxu0 %v225
    %529 = vmatpush1.bf16.msra.mxu0 %v224
    %530 = vmatprep.subr.bf16.mxu0 %v229
    %531 = vmatpush1.bf16.msra.mxu0 %v228
    %532 = vmatprep.subr.bf16.mxu0 %v233
    %533 = vmatpush1.bf16.msra.mxu0 %v232
    %534 = vmatprep.subr.bf16.mxu0 0
    %535 = vmatpush1.bf16.msra.mxu0 0
    %536 = vmatprep.subr.bf16.mxu0 0
    %537 = vmatpush1.bf16.msra.mxu0 0
    %538 = vmatprep.subr.bf16.mxu0 0
    %539 = vmatpush1.bf16.msra.mxu0 0
    %540 = vmatprep.subr.bf16.mxu0 0
    %541 = vmatpush1.bf16.msra.mxu0 0
    %542 = vmatprep.subr.bf16.mxu0 0
    %543 = vmatpush1.bf16.msra.mxu0 0
    %544 = vmatprep.subr.bf16.mxu0 0
    %545 = vmatpush1.bf16.msra.mxu0 0
    %546 = vmatprep.subr.bf16.mxu0 0
    %547 = vmatpush1.bf16.msra.mxu0 0
    %548 = vmatprep.subr.bf16.mxu0 0
    %549 = vmatpush1.bf16.msra.mxu0 0
    %550 = vmatprep.mubr.bf16.mxu0 0
    %551 = vmatmul.mubr.bf16.gmra.mrb[0].mxu0 %v517
    %v552 = vpop.f32.mrb[0].mxu0
    %v553 = vadd.f32 0.0, %v552
    %v554 = vpop.f32.mrb[0].mxu0
    %v555 = vadd.f32 0.0, %v554
    %v556 = vpop.f32.mrb[0].mxu0
    %v557 = vpop.f32.mrb[0].mxu0
    %558 = vdwg.mxu0
    %559 = vmatprep.subr.bf16.mxu0 %v207
    %560 = vmatpush1.bf16.msra.mxu0 %v206
    %561 = vmatprep.subr.bf16.mxu0 %v211
    %562 = vmatpush1.bf16.msra.mxu0 %v210
    %563 = vmatprep.subr.bf16.mxu0 %v215
    %564 = vmatpush1.bf16.msra.mxu0 %v214
    %565 = vmatprep.subr.bf16.mxu0 %v219
    %566 = vmatpush1.bf16.msra.mxu0 %v218
    %567 = vmatprep.subr.bf16.mxu0 %v223
    %568 = vmatpush1.bf16.msra.mxu0 %v222
    %569 = vmatprep.subr.bf16.mxu0 %v227
    %570 = vmatpush1.bf16.msra.mxu0 %v226
    %571 = vmatprep.subr.bf16.mxu0 %v231
    %572 = vmatpush1.bf16.msra.mxu0 %v230
    %573 = vmatprep.subr.bf16.mxu0 %v235
    %574 = vmatpush1.bf16.msra.mxu0 %v234
    %575 = vmatprep.subr.bf16.mxu0 0
    %576 = vmatpush1.bf16.msra.mxu0 0
    %577 = vmatprep.subr.bf16.mxu0 0
    %578 = vmatpush1.bf16.msra.mxu0 0
    %579 = vmatprep.subr.bf16.mxu0 0
    %580 = vmatpush1.bf16.msra.mxu0 0
    %581 = vmatprep.subr.bf16.mxu0 0
    %582 = vmatpush1.bf16.msra.mxu0 0
    %583 = vmatprep.subr.bf16.mxu0 0
    %584 = vmatpush1.bf16.msra.mxu0 0
    %585 = vmatprep.subr.bf16.mxu0 0
    %586 = vmatpush1.bf16.msra.mxu0 0
    %587 = vmatprep.subr.bf16.mxu0 0
    %588 = vmatpush1.bf16.msra.mxu0 0
    %589 = vmatprep.subr.bf16.mxu0 0
    %590 = vmatpush1.bf16.msra.mxu0 0
    %591 = vmatprep.mubr.bf16.mxu0 0
    %592 = vmatmul.mubr.bf16.gmra.mrb[0].mxu0 %v517
    %v593 = vpop.f32.mrb[0].mxu0
    %v594 = vadd.f32 0.0, %v593
    %v595 = vpop.f32.mrb[0].mxu0
    %v596 = vadd.f32 0.0, %v595
    %v597 = vpop.f32.mrb[0].mxu0
    %v598 = vpop.f32.mrb[0].mxu0
    %599 = vdwg.mxu0
    %v600 = vadd.f32 %v513, %v553
    %v601 = vadd.f32 %v514, %v555
    %v602 = vadd.f32 %v515, %v594
    %v603 = vadd.f32 %v516, %v596
    %v604 = vxor.u32 %v600, 2147483648
    %v605 = vxor.u32 %v601, 2147483648
    %v606 = vxor.u32 %v602, 2147483648
    %v607 = vxor.u32 %v603, 2147483648
    %v608 = vmul.f32 %v604, 1.442695
    %v609 = vpow.pop %v608
    %v610 = vmul.f32 %v605, 1.442695
    %v611 = vpow.pop %v610
    %v612 = vmul.f32 %v606, 1.442695
    %v613 = vpow.pop %v612
    %v614 = vmul.f32 %v607, 1.442695
    %v615 = vpow.pop %v614
    %v616 = vadd.f32 %v609, 1.0
    %v617 = vadd.f32 %v611, 1.0
    %v618 = vadd.f32 %v613, 1.0
    %v619 = vadd.f32 %v615, 1.0
    %v620 = vrcp.pop %v616
    %v621 = vmul.f32 1.0, %v620
    %v622 = vrcp.pop %v617
    %v623 = vmul.f32 1.0, %v622
    %v624 = vrcp.pop %v618
    %v625 = vmul.f32 1.0, %v624
    %v626 = vrcp.pop %v619
    %v627 = vmul.f32 1.0, %v626
    %v628 = vmul.f32 %v625, 2.0
    %v629 = vsub.f32 %v628, 1.0
    %v630 = vmul.f32 %v623, %v507
    %v631 = vmul.f32 %v621, %v629
    %v632 = vadd.f32 %v630, %v631
    %v633 = vtanh.pop %v632
    %v634 = vmul.f32 %v627, %v633
    %s635 = smul.u32 3, 4
    %s636 = smul.addr %s635, 8
    %s637 = scalar_lea.vmem [#allocation4], %s636
    %v638 = vld [vmem:[%s637] sm:$0xff]
    %v639 = vld [vmem:[%s637 + $0x8] sm:$0xff]
    %v640 = vld [vmem:[%s637 + $0x10] sm:$0xff]
    %v641 = vld [vmem:[%s637 + $0x18] sm:$0xff]
    %v642 = vpack.c.bf16 %v634, %v634
    %643 = vmatprep.subr.bf16.mxu0 %v205
    %644 = vmatpush1.bf16.msra.mxu0 %v204
    %645 = vmatprep.subr.bf16.mxu0 %v209
    %646 = vmatpush1.bf16.msra.mxu0 %v208
    %647 = vmatprep.subr.bf16.mxu0 %v213
    %648 = vmatpush1.bf16.msra.mxu0 %v212
    %649 = vmatprep.subr.bf16.mxu0 %v217
    %650 = vmatpush1.bf16.msra.mxu0 %v216
    %651 = vmatprep.subr.bf16.mxu0 %v221
    %652 = vmatpush1.bf16.msra.mxu0 %v220
    %653 = vmatprep.subr.bf16.mxu0 %v225
    %654 = vmatpush1.bf16.msra.mxu0 %v224
    %655 = vmatprep.subr.bf16.mxu0 %v229
    %656 = vmatpush1.bf16.msra.mxu0 %v228
    %657 = vmatprep.subr.bf16.mxu0 %v233
    %658 = vmatpush1.bf16.msra.mxu0 %v232
    %659 = vmatprep.subr.bf16.mxu0 0
    %660 = vmatpush1.bf16.msra.mxu0 0
    %661 = vmatprep.subr.bf16.mxu0 0
    %662 = vmatpush1.bf16.msra.mxu0 0
    %663 = vmatprep.subr.bf16.mxu0 0
    %664 = vmatpush1.bf16.msra.mxu0 0
    %665 = vmatprep.subr.bf16.mxu0 0
    %666 = vmatpush1.bf16.msra.mxu0 0
    %667 = vmatprep.subr.bf16.mxu0 0
    %668 = vmatpush1.bf16.msra.mxu0 0
    %669 = vmatprep.subr.bf16.mxu0 0
    %670 = vmatpush1.bf16.msra.mxu0 0
    %671 = vmatprep.subr.bf16.mxu0 0
    %672 = vmatpush1.bf16.msra.mxu0 0
    %673 = vmatprep.subr.bf16.mxu0 0
    %674 = vmatpush1.bf16.msra.mxu0 0
    %675 = vmatprep.mubr.bf16.mxu0 0
    %676 = vmatmul.mubr.bf16.gmra.mrb[0].mxu0 %v642
    %v677 = vpop.f32.mrb[0].mxu0
    %v678 = vadd.f32 0.0, %v677
    %v679 = vpop.f32.mrb[0].mxu0
    %v680 = vadd.f32 0.0, %v679
    %v681 = vpop.f32.mrb[0].mxu0
    %v682 = vpop.f32.mrb[0].mxu0
    %683 = vdwg.mxu0
    %684 = vmatprep.subr.bf16.mxu0 %v207
    %685 = vmatpush1.bf16.msra.mxu0 %v206
    %686 = vmatprep.subr.bf16.mxu0 %v211
    %687 = vmatpush1.bf16.msra.mxu0 %v210
    %688 = vmatprep.subr.bf16.mxu0 %v215
    %689 = vmatpush1.bf16.msra.mxu0 %v214
    %690 = vmatprep.subr.bf16.mxu0 %v219
    %691 = vmatpush1.bf16.msra.mxu0 %v218
    %692 = vmatprep.subr.bf16.mxu0 %v223
    %693 = vmatpush1.bf16.msra.mxu0 %v222
    %694 = vmatprep.subr.bf16.mxu0 %v227
    %695 = vmatpush1.bf16.msra.mxu0 %v226
    %696 = vmatprep.subr.bf16.mxu0 %v231
    %697 = vmatpush1.bf16.msra.mxu0 %v230
    %698 = vmatprep.subr.bf16.mxu0 %v235
    %699 = vmatpush1.bf16.msra.mxu0 %v234
    %700 = vmatprep.subr.bf16.mxu0 0
    %701 = vmatpush1.bf16.msra.mxu0 0
    %702 = vmatprep.subr.bf16.mxu0 0
    %703 = vmatpush1.bf16.msra.mxu0 0
    %704 = vmatprep.subr.bf16.mxu0 0
    %705 = vmatpush1.bf16.msra.mxu0 0
    %706 = vmatprep.subr.bf16.mxu0 0
    %707 = vmatpush1.bf16.msra.mxu0 0
    %708 = vmatprep.subr.bf16.mxu0 0
    %709 = vmatpush1.bf16.msra.mxu0 0
    %710 = vmatprep.subr.bf16.mxu0 0
    %711 = vmatpush1.bf16.msra.mxu0 0
    %712 = vmatprep.subr.bf16.mxu0 0
    %713 = vmatpush1.bf16.msra.mxu0 0
    %714 = vmatprep.subr.bf16.mxu0 0
    %715 = vmatpush1.bf16.msra.mxu0 0
    %716 = vmatprep.mubr.bf16.mxu0 0
    %717 = vmatmul.mubr.bf16.gmra.mrb[0].mxu0 %v642
    %v718 = vpop.f32.mrb[0].mxu0
    %v719 = vadd.f32 0.0, %v718
    %v720 = vpop.f32.mrb[0].mxu0
    %v721 = vadd.f32 0.0, %v720
    %v722 = vpop.f32.mrb[0].mxu0
    %v723 = vpop.f32.mrb[0].mxu0
    %724 = vdwg.mxu0
    %v725 = vadd.f32 %v638, %v678
    %v726 = vadd.f32 %v639, %v680
    %v727 = vadd.f32 %v640, %v719
    %v728 = vadd.f32 %v641, %v721
    %v729 = vxor.u32 %v725, 2147483648
    %v730 = vxor.u32 %v726, 2147483648
    %v731 = vxor.u32 %v727, 2147483648
    %v732 = vxor.u32 %v728, 2147483648
    %v733 = vmul.f32 %v729, 1.442695
    %v734 = vpow.pop %v733
    %v735 = vmul.f32 %v730, 1.442695
    %v736 = vpow.pop %v735
    %v737 = vmul.f32 %v731, 1.442695
    %v738 = vpow.pop %v737
    %v739 = vmul.f32 %v732, 1.442695
    %v740 = vpow.pop %v739
    %v741 = vadd.f32 %v734, 1.0
    %v742 = vadd.f32 %v736, 1.0
    %v743 = vadd.f32 %v738, 1.0
    %v744 = vadd.f32 %v740, 1.0
    %v745 = vrcp.pop %v741
    %v746 = vmul.f32 1.0, %v745
    %v747 = vrcp.pop %v742
    %v748 = vmul.f32 1.0, %v747
    %v749 = vrcp.pop %v743
    %v750 = vmul.f32 1.0, %v749
    %v751 = vrcp.pop %v744
    %v752 = vmul.f32 1.0, %v751
    %v753 = vmul.f32 %v750, 2.0
    %v754 = vsub.f32 %v753, 1.0
    %v755 = vmul.f32 %v748, %v632
    %v756 = vmul.f32 %v746, %v754
    %v757 = vadd.f32 %v755, %v756
    %v758 = vtanh.pop %v757
    %v759 = vmul.f32 %v752, %v758
    %s760 = smul.u32 4, 4
    %s761 = smul.addr %s760, 8
    %s762 = scalar_lea.vmem [#allocation4], %s761
    %v763 = vld [vmem:[%s762] sm:$0xff]
    %v764 = vld [vmem:[%s762 + $0x8] sm:$0xff]
    %v765 = vld [vmem:[%s762 + $0x10] sm:$0xff]
    %v766 = vld [vmem:[%s762 + $0x18] sm:$0xff]
    %v767 = vpack.c.bf16 %v759, %v759
    %768 = vmatprep.subr.bf16.mxu0 %v205
    %769 = vmatpush1.bf16.msra.mxu0 %v204
    %770 = vmatprep.subr.bf16.mxu0 %v209
    %771 = vmatpush1.bf16.msra.mxu0 %v208
    %772 = vmatprep.subr.bf16.mxu0 %v213
    %773 = vmatpush1.bf16.msra.mxu0 %v212
    %774 = vmatprep.subr.bf16.mxu0 %v217
    %775 = vmatpush1.bf16.msra.mxu0 %v216
    %776 = vmatprep.subr.bf16.mxu0 %v221
    %777 = vmatpush1.bf16.msra.mxu0 %v220
    %778 = vmatprep.subr.bf16.mxu0 %v225
    %779 = vmatpush1.bf16.msra.mxu0 %v224
    %780 = vmatprep.subr.bf16.mxu0 %v229
    %781 = vmatpush1.bf16.msra.mxu0 %v228
    %782 = vmatprep.subr.bf16.mxu0 %v233
    %783 = vmatpush1.bf16.msra.mxu0 %v232
    %784 = vmatprep.subr.bf16.mxu0 0
    %785 = vmatpush1.bf16.msra.mxu0 0
    %786 = vmatprep.subr.bf16.mxu0 0
    %787 = vmatpush1.bf16.msra.mxu0 0
    %788 = vmatprep.subr.bf16.mxu0 0
    %789 = vmatpush1.bf16.msra.mxu0 0
    %790 = vmatprep.subr.bf16.mxu0 0
    %791 = vmatpush1.bf16.msra.mxu0 0
    %792 = vmatprep.subr.bf16.mxu0 0
    %793 = vmatpush1.bf16.msra.mxu0 0
    %794 = vmatprep.subr.bf16.mxu0 0
    %795 = vmatpush1.bf16.msra.mxu0 0
    %796 = vmatprep.subr.bf16.mxu0 0
    %797 = vmatpush1.bf16.msra.mxu0 0
    %798 = vmatprep.subr.bf16.mxu0 0
    %799 = vmatpush1.bf16.msra.mxu0 0
    %800 = vmatprep.mubr.bf16.mxu0 0
    %801 = vmatmul.mubr.bf16.gmra.mrb[0].mxu0 %v767
    %v802 = vpop.f32.mrb[0].mxu0
    %v803 = vadd.f32 0.0, %v802
    %v804 = vpop.f32.mrb[0].mxu0
    %v805 = vadd.f32 0.0, %v804
    %v806 = vpop.f32.mrb[0].mxu0
    %v807 = vpop.f32.mrb[0].mxu0
    %808 = vdwg.mxu0
    %809 = vmatprep.subr.bf16.mxu0 %v207
    %810 = vmatpush1.bf16.msra.mxu0 %v206
    %811 = vmatprep.subr.bf16.mxu0 %v211
    %812 = vmatpush1.bf16.msra.mxu0 %v210
    %813 = vmatprep.subr.bf16.mxu0 %v215
    %814 = vmatpush1.bf16.msra.mxu0 %v214
    %815 = vmatprep.subr.bf16.mxu0 %v219
    %816 = vmatpush1.bf16.msra.mxu0 %v218
    %817 = vmatprep.subr.bf16.mxu0 %v223
    %818 = vmatpush1.bf16.msra.mxu0 %v222
    %819 = vmatprep.subr.bf16.mxu0 %v227
    %820 = vmatpush1.bf16.msra.mxu0 %v226
    %821 = vmatprep.subr.bf16.mxu0 %v231
    %822 = vmatpush1.bf16.msra.mxu0 %v230
    %823 = vmatprep.subr.bf16.mxu0 %v235
    %824 = vmatpush1.bf16.msra.mxu0 %v234
    %825 = vmatprep.subr.bf16.mxu0 0
    %826 = vmatpush1.bf16.msra.mxu0 0
    %827 = vmatprep.subr.bf16.mxu0 0
    %828 = vmatpush1.bf16.msra.mxu0 0
    %829 = vmatprep.subr.bf16.mxu0 0
    %830 = vmatpush1.bf16.msra.mxu0 0
    %831 = vmatprep.subr.bf16.mxu0 0
    %832 = vmatpush1.bf16.msra.mxu0 0
    %833 = vmatprep.subr.bf16.mxu0 0
    %834 = vmatpush1.bf16.msra.mxu0 0
    %835 = vmatprep.subr.bf16.mxu0 0
    %836 = vmatpush1.bf16.msra.mxu0 0
    %837 = vmatprep.subr.bf16.mxu0 0
    %838 = vmatpush1.bf16.msra.mxu0 0
    %839 = vmatprep.subr.bf16.mxu0 0
    %840 = vmatpush1.bf16.msra.mxu0 0
    %841 = vmatprep.mubr.bf16.mxu0 0
    %842 = vmatmul.mubr.bf16.gmra.mrb[0].mxu0 %v767
    %v843 = vpop.f32.mrb[0].mxu0
    %v844 = vadd.f32 0.0, %v843
    %v845 = vpop.f32.mrb[0].mxu0
    %v846 = vadd.f32 0.0, %v845
    %v847 = vpop.f32.mrb[0].mxu0
    %v848 = vpop.f32.mrb[0].mxu0
    %849 = vdwg.mxu0
    %v850 = vadd.f32 %v763, %v803
    %v851 = vadd.f32 %v764, %v805
    %v852 = vadd.f32 %v765, %v844
    %v853 = vadd.f32 %v766, %v846
    %v854 = vxor.u32 %v850, 2147483648
    %v855 = vxor.u32 %v851, 2147483648
    %v856 = vxor.u32 %v852, 2147483648
    %v857 = vxor.u32 %v853, 2147483648
    %v858 = vmul.f32 %v854, 1.442695
    %v859 = vpow.pop %v858
    %v860 = vmul.f32 %v855, 1.442695
    %v861 = vpow.pop %v860
    %v862 = vmul.f32 %v856, 1.442695
    %v863 = vpow.pop %v862
    %v864 = vmul.f32 %v857, 1.442695
    %v865 = vpow.pop %v864
    %v866 = vadd.f32 %v859, 1.0
    %v867 = vadd.f32 %v861, 1.0
    %v868 = vadd.f32 %v863, 1.0
    %v869 = vadd.f32 %v865, 1.0
    %v870 = vrcp.pop %v866
    %v871 = vmul.f32 1.0, %v870
    %v872 = vrcp.pop %v867
    %v873 = vmul.f32 1.0, %v872
    %v874 = vrcp.pop %v868
    %v875 = vmul.f32 1.0, %v874
    %v876 = vrcp.pop %v869
    %v877 = vmul.f32 1.0, %v876
    %v878 = vmul.f32 %v875, 2.0
    %v879 = vsub.f32 %v878, 1.0
    %v880 = vmul.f32 %v873, %v757
    %v881 = vmul.f32 %v871, %v879
    %v882 = vadd.f32 %v880, %v881
    %v883 = vtanh.pop %v882
    %v884 = vmul.f32 %v877, %v883
    %s885 = smul.u32 5, 4
    %s886 = smul.addr %s885, 8
    %s887 = scalar_lea.vmem [#allocation4], %s886
    %v888 = vld [vmem:[%s887] sm:$0xff]
    %v889 = vld [vmem:[%s887 + $0x8] sm:$0xff]
    %v890 = vld [vmem:[%s887 + $0x10] sm:$0xff]
    %v891 = vld [vmem:[%s887 + $0x18] sm:$0xff]
    %v892 = vpack.c.bf16 %v884, %v884
    %893 = vmatprep.subr.bf16.mxu0 %v205
    %894 = vmatpush1.bf16.msra.mxu0 %v204
    %895 = vmatprep.subr.bf16.mxu0 %v209
    %896 = vmatpush1.bf16.msra.mxu0 %v208
    %897 = vmatprep.subr.bf16.mxu0 %v213
    %898 = vmatpush1.bf16.msra.mxu0 %v212
    %899 = vmatprep.subr.bf16.mxu0 %v217
    %900 = vmatpush1.bf16.msra.mxu0 %v216
    %901 = vmatprep.subr.bf16.mxu0 %v221
    %902 = vmatpush1.bf16.msra.mxu0 %v220
    %903 = vmatprep.subr.bf16.mxu0 %v225
    %904 = vmatpush1.bf16.msra.mxu0 %v224
    %905 = vmatprep.subr.bf16.mxu0 %v229
    %906 = vmatpush1.bf16.msra.mxu0 %v228
    %907 = vmatprep.subr.bf16.mxu0 %v233
    %908 = vmatpush1.bf16.msra.mxu0 %v232
    %909 = vmatprep.subr.bf16.mxu0 0
    %910 = vmatpush1.bf16.msra.mxu0 0
    %911 = vmatprep.subr.bf16.mxu0 0
    %912 = vmatpush1.bf16.msra.mxu0 0
    %913 = vmatprep.subr.bf16.mxu0 0
    %914 = vmatpush1.bf16.msra.mxu0 0
    %915 = vmatprep.subr.bf16.mxu0 0
    %916 = vmatpush1.bf16.msra.mxu0 0
    %917 = vmatprep.subr.bf16.mxu0 0
    %918 = vmatpush1.bf16.msra.mxu0 0
    %919 = vmatprep.subr.bf16.mxu0 0
    %920 = vmatpush1.bf16.msra.mxu0 0
    %921 = vmatprep.subr.bf16.mxu0 0
    %922 = vmatpush1.bf16.msra.mxu0 0
    %923 = vmatprep.subr.bf16.mxu0 0
    %924 = vmatpush1.bf16.msra.mxu0 0
    %925 = vmatprep.mubr.bf16.mxu0 0
    %926 = vmatmul.mubr.bf16.gmra.mrb[0].mxu0 %v892
    %v927 = vpop.f32.mrb[0].mxu0
    %v928 = vadd.f32 0.0, %v927
    %v929 = vpop.f32.mrb[0].mxu0
    %v930 = vadd.f32 0.0, %v929
    %v931 = vpop.f32.mrb[0].mxu0
    %v932 = vpop.f32.mrb[0].mxu0
    %933 = vdwg.mxu0
    %934 = vmatprep.subr.bf16.mxu0 %v207
    %935 = vmatpush1.bf16.msra.mxu0 %v206
    %936 = vmatprep.subr.bf16.mxu0 %v211
    %937 = vmatpush1.bf16.msra.mxu0 %v210
    %938 = vmatprep.subr.bf16.mxu0 %v215
    %939 = vmatpush1.bf16.msra.mxu0 %v214
    %940 = vmatprep.subr.bf16.mxu0 %v219
    %941 = vmatpush1.bf16.msra.mxu0 %v218
    %942 = vmatprep.subr.bf16.mxu0 %v223
    %943 = vmatpush1.bf16.msra.mxu0 %v222
    %944 = vmatprep.subr.bf16.mxu0 %v227
    %945 = vmatpush1.bf16.msra.mxu0 %v226
    %946 = vmatprep.subr.bf16.mxu0 %v231
    %947 = vmatpush1.bf16.msra.mxu0 %v230
    %948 = vmatprep.subr.bf16.mxu0 %v235
    %949 = vmatpush1.bf16.msra.mxu0 %v234
    %950 = vmatprep.subr.bf16.mxu0 0
    %951 = vmatpush1.bf16.msra.mxu0 0
    %952 = vmatprep.subr.bf16.mxu0 0
    %953 = vmatpush1.bf16.msra.mxu0 0
    %954 = vmatprep.subr.bf16.mxu0 0
    %955 = vmatpush1.bf16.msra.mxu0 0
    %956 = vmatprep.subr.bf16.mxu0 0
    %957 = vmatpush1.bf16.msra.mxu0 0
    %958 = vmatprep.subr.bf16.mxu0 0
    %959 = vmatpush1.bf16.msra.mxu0 0
    %960 = vmatprep.subr.bf16.mxu0 0
    %961 = vmatpush1.bf16.msra.mxu0 0
    %962 = vmatprep.subr.bf16.mxu0 0
    %963 = vmatpush1.bf16.msra.mxu0 0
    %964 = vmatprep.subr.bf16.mxu0 0
    %965 = vmatpush1.bf16.msra.mxu0 0
    %966 = vmatprep.mubr.bf16.mxu0 0
    %967 = vmatmul.mubr.bf16.gmra.mrb[0].mxu0 %v892
    %v968 = vpop.f32.mrb[0].mxu0
    %v969 = vadd.f32 0.0, %v968
    %v970 = vpop.f32.mrb[0].mxu0
    %v971 = vadd.f32 0.0, %v970
    %v972 = vpop.f32.mrb[0].mxu0
    %v973 = vpop.f32.mrb[0].mxu0
    %974 = vdwg.mxu0
    %v975 = vadd.f32 %v888, %v928
    %v976 = vadd.f32 %v889, %v930
    %v977 = vadd.f32 %v890, %v969
    %v978 = vadd.f32 %v891, %v971
    %v979 = vxor.u32 %v975, 2147483648
    %v980 = vxor.u32 %v976, 2147483648
    %v981 = vxor.u32 %v977, 2147483648
    %v982 = vxor.u32 %v978, 2147483648
    %v983 = vmul.f32 %v979, 1.442695
    %v984 = vpow.pop %v983
    %v985 = vmul.f32 %v980, 1.442695
    %v986 = vpow.pop %v985
    %v987 = vmul.f32 %v981, 1.442695
    %v988 = vpow.pop %v987
    %v989 = vmul.f32 %v982, 1.442695
    %v990 = vpow.pop %v989
    %v991 = vadd.f32 %v984, 1.0
    %v992 = vadd.f32 %v986, 1.0
    %v993 = vadd.f32 %v988, 1.0
    %v994 = vadd.f32 %v990, 1.0
    %v995 = vrcp.pop %v991
    %v996 = vmul.f32 1.0, %v995
    %v997 = vrcp.pop %v992
    %v998 = vmul.f32 1.0, %v997
    %v999 = vrcp.pop %v993
    %v1000 = vmul.f32 1.0, %v999
    %v1001 = vrcp.pop %v994
    %v1002 = vmul.f32 1.0, %v1001
    %v1003 = vmul.f32 %v1000, 2.0
    %v1004 = vsub.f32 %v1003, 1.0
    %v1005 = vmul.f32 %v998, %v882
    %v1006 = vmul.f32 %v996, %v1004
    %v1007 = vadd.f32 %v1005, %v1006
    %v1008 = vtanh.pop %v1007
    %v1009 = vmul.f32 %v1002, %v1008
    %s1010 = smul.u32 6, 4
    %s1011 = smul.addr %s1010, 8
    %s1012 = scalar_lea.vmem [#allocation4], %s1011
    %v1013 = vld [vmem:[%s1012] sm:$0xff]
    %v1014 = vld [vmem:[%s1012 + $0x8] sm:$0xff]
    %v1015 = vld [vmem:[%s1012 + $0x10] sm:$0xff]
    %v1016 = vld [vmem:[%s1012 + $0x18] sm:$0xff]
    %v1017 = vpack.c.bf16 %v1009, %v1009
    %1018 = vmatprep.subr.bf16.mxu0 %v205
    %1019 = vmatpush1.bf16.msra.mxu0 %v204
    %1020 = vmatprep.subr.bf16.mxu0 %v209
    %1021 = vmatpush1.bf16.msra.mxu0 %v208
    %1022 = vmatprep.subr.bf16.mxu0 %v213
    %1023 = vmatpush1.bf16.msra.mxu0 %v212
    %1024 = vmatprep.subr.bf16.mxu0 %v217
    %1025 = vmatpush1.bf16.msra.mxu0 %v216
    %1026 = vmatprep.subr.bf16.mxu0 %v221
    %1027 = vmatpush1.bf16.msra.mxu0 %v220
    %1028 = vmatprep.subr.bf16.mxu0 %v225
    %1029 = vmatpush1.bf16.msra.mxu0 %v224
    %1030 = vmatprep.subr.bf16.mxu0 %v229
    %1031 = vmatpush1.bf16.msra.mxu0 %v228
    %1032 = vmatprep.subr.bf16.mxu0 %v233
    %1033 = vmatpush1.bf16.msra.mxu0 %v232
    %1034 = vmatprep.subr.bf16.mxu0 0
    %1035 = vmatpush1.bf16.msra.mxu0 0
    %1036 = vmatprep.subr.bf16.mxu0 0
    %1037 = vmatpush1.bf16.msra.mxu0 0
    %1038 = vmatprep.subr.bf16.mxu0 0
    %1039 = vmatpush1.bf16.msra.mxu0 0
    %1040 = vmatprep.subr.bf16.mxu0 0
    %1041 = vmatpush1.bf16.msra.mxu0 0
    %1042 = vmatprep.subr.bf16.mxu0 0
    %1043 = vmatpush1.bf16.msra.mxu0 0
    %1044 = vmatprep.subr.bf16.mxu0 0
    %1045 = vmatpush1.bf16.msra.mxu0 0
    %1046 = vmatprep.subr.bf16.mxu0 0
    %1047 = vmatpush1.bf16.msra.mxu0 0
    %1048 = vmatprep.subr.bf16.mxu0 0
    %1049 = vmatpush1.bf16.msra.mxu0 0
    %1050 = vmatprep.mubr.bf16.mxu0 0
    %1051 = vmatmul.mubr.bf16.gmra.mrb[0].mxu0 %v1017
    %v1052 = vpop.f32.mrb[0].mxu0
    %v1053 = vadd.f32 0.0, %v1052
    %v1054 = vpop.f32.mrb[0].mxu0
    %v1055 = vadd.f32 0.0, %v1054
    %v1056 = vpop.f32.mrb[0].mxu0
    %v1057 = vpop.f32.mrb[0].mxu0
    %1058 = vdwg.mxu0
    %1059 = vmatprep.subr.bf16.mxu0 %v207
    %1060 = vmatpush1.bf16.msra.mxu0 %v206
    %1061 = vmatprep.subr.bf16.mxu0 %v211
    %1062 = vmatpush1.bf16.msra.mxu0 %v210
    %1063 = vmatprep.subr.bf16.mxu0 %v215
    %1064 = vmatpush1.bf16.msra.mxu0 %v214
    %1065 = vmatprep.subr.bf16.mxu0 %v219
    %1066 = vmatpush1.bf16.msra.mxu0 %v218
    %1067 = vmatprep.subr.bf16.mxu0 %v223
    %1068 = vmatpush1.bf16.msra.mxu0 %v222
    %1069 = vmatprep.subr.bf16.mxu0 %v227
    %1070 = vmatpush1.bf16.msra.mxu0 %v226
    %1071 = vmatprep.subr.bf16.mxu0 %v231
    %1072 = vmatpush1.bf16.msra.mxu0 %v230
    %1073 = vmatprep.subr.bf16.mxu0 %v235
    %1074 = vmatpush1.bf16.msra.mxu0 %v234
    %1075 = vmatprep.subr.bf16.mxu0 0
    %1076 = vmatpush1.bf16.msra.mxu0 0
    %1077 = vmatprep.subr.bf16.mxu0 0
    %1078 = vmatpush1.bf16.msra.mxu0 0
    %1079 = vmatprep.subr.bf16.mxu0 0
    %1080 = vmatpush1.bf16.msra.mxu0 0
    %1081 = vmatprep.subr.bf16.mxu0 0
    %1082 = vmatpush1.bf16.msra.mxu0 0
    %1083 = vmatprep.subr.bf16.mxu0 0
    %1084 = vmatpush1.bf16.msra.mxu0 0
    %1085 = vmatprep.subr.bf16.mxu0 0
    %1086 = vmatpush1.bf16.msra.mxu0 0
    %1087 = vmatprep.subr.bf16.mxu0 0
    %1088 = vmatpush1.bf16.msra.mxu0 0
    %1089 = vmatprep.subr.bf16.mxu0 0
    %1090 = vmatpush1.bf16.msra.mxu0 0
    %1091 = vmatprep.mubr.bf16.mxu0 0
    %1092 = vmatmul.mubr.bf16.gmra.mrb[0].mxu0 %v1017
    %v1093 = vpop.f32.mrb[0].mxu0
    %v1094 = vadd.f32 0.0, %v1093
    %v1095 = vpop.f32.mrb[0].mxu0
    %v1096 = vadd.f32 0.0, %v1095
    %v1097 = vpop.f32.mrb[0].mxu0
    %v1098 = vpop.f32.mrb[0].mxu0
    %1099 = vdwg.mxu0
    %v1100 = vadd.f32 %v1013, %v1053
    %v1101 = vadd.f32 %v1014, %v1055
    %v1102 = vadd.f32 %v1015, %v1094
    %v1103 = vadd.f32 %v1016, %v1096
    %v1104 = vxor.u32 %v1100, 2147483648
    %v1105 = vxor.u32 %v1101, 2147483648
    %v1106 = vxor.u32 %v1102, 2147483648
    %v1107 = vxor.u32 %v1103, 2147483648
    %v1108 = vmul.f32 %v1104, 1.442695
    %v1109 = vpow.pop %v1108
    %v1110 = vmul.f32 %v1105, 1.442695
    %v1111 = vpow.pop %v1110
    %v1112 = vmul.f32 %v1106, 1.442695
    %v1113 = vpow.pop %v1112
    %v1114 = vmul.f32 %v1107, 1.442695
    %v1115 = vpow.pop %v1114
    %v1116 = vadd.f32 %v1109, 1.0
    %v1117 = vadd.f32 %v1111, 1.0
    %v1118 = vadd.f32 %v1113, 1.0
    %v1119 = vadd.f32 %v1115, 1.0
    %v1120 = vrcp.pop %v1116
    %v1121 = vmul.f32 1.0, %v1120
    %v1122 = vrcp.pop %v1117
    %v1123 = vmul.f32 1.0, %v1122
    %v1124 = vrcp.pop %v1118
    %v1125 = vmul.f32 1.0, %v1124
    %v1126 = vrcp.pop %v1119
    %v1127 = vmul.f32 1.0, %v1126
    %v1128 = vmul.f32 %v1125, 2.0
    %v1129 = vsub.f32 %v1128, 1.0
    %v1130 = vmul.f32 %v1123, %v1007
    %v1131 = vmul.f32 %v1121, %v1129
    %v1132 = vadd.f32 %v1130, %v1131
    %v1133 = vtanh.pop %v1132
    %v1134 = vmul.f32 %v1127, %v1133
    %s1135 = smul.u32 7, 4
    %s1136 = smul.addr %s1135, 8
    %s1137 = scalar_lea.vmem [#allocation4], %s1136
    %v1138 = vld [vmem:[%s1137] sm:$0xff]
    %v1139 = vld [vmem:[%s1137 + $0x8] sm:$0xff]
    %v1140 = vld [vmem:[%s1137 + $0x10] sm:$0xff]
    %v1141 = vld [vmem:[%s1137 + $0x18] sm:$0xff]
    %v1142 = vpack.c.bf16 %v1134, %v1134
    %1143 = vmatprep.subr.bf16.mxu0 %v205
    %1144 = vmatpush1.bf16.msra.mxu0 %v204
    %1145 = vmatprep.subr.bf16.mxu0 %v209
    %1146 = vmatpush1.bf16.msra.mxu0 %v208
    %1147 = vmatprep.subr.bf16.mxu0 %v213
    %1148 = vmatpush1.bf16.msra.mxu0 %v212
    %1149 = vmatprep.subr.bf16.mxu0 %v217
    %1150 = vmatpush1.bf16.msra.mxu0 %v216
    %1151 = vmatprep.subr.bf16.mxu0 %v221
    %1152 = vmatpush1.bf16.msra.mxu0 %v220
    %1153 = vmatprep.subr.bf16.mxu0 %v225
    %1154 = vmatpush1.bf16.msra.mxu0 %v224
    %1155 = vmatprep.subr.bf16.mxu0 %v229
    %1156 = vmatpush1.bf16.msra.mxu0 %v228
    %1157 = vmatprep.subr.bf16.mxu0 %v233
    %1158 = vmatpush1.bf16.msra.mxu0 %v232
    %1159 = vmatprep.subr.bf16.mxu0 0
    %1160 = vmatpush1.bf16.msra.mxu0 0
    %1161 = vmatprep.subr.bf16.mxu0 0
    %1162 = vmatpush1.bf16.msra.mxu0 0
    %1163 = vmatprep.subr.bf16.mxu0 0
    %1164 = vmatpush1.bf16.msra.mxu0 0
    %1165 = vmatprep.subr.bf16.mxu0 0
    %1166 = vmatpush1.bf16.msra.mxu0 0
    %1167 = vmatprep.subr.bf16.mxu0 0
    %1168 = vmatpush1.bf16.msra.mxu0 0
    %1169 = vmatprep.subr.bf16.mxu0 0
    %1170 = vmatpush1.bf16.msra.mxu0 0
    %1171 = vmatprep.subr.bf16.mxu0 0
    %1172 = vmatpush1.bf16.msra.mxu0 0
    %1173 = vmatprep.subr.bf16.mxu0 0
    %1174 = vmatpush1.bf16.msra.mxu0 0
    %1175 = vmatprep.mubr.bf16.mxu0 0
    %1176 = vmatmul.mubr.bf16.gmra.mrb[0].mxu0 %v1142
    %v1177 = vpop.f32.mrb[0].mxu0
    %v1178 = vadd.f32 0.0, %v1177
    %v1179 = vpop.f32.mrb[0].mxu0
    %v1180 = vadd.f32 0.0, %v1179
    %v1181 = vpop.f32.mrb[0].mxu0
    %v1182 = vpop.f32.mrb[0].mxu0
    %1183 = vdwg.mxu0
    %1184 = vmatprep.subr.bf16.mxu0 %v207
    %1185 = vmatpush1.bf16.msra.mxu0 %v206
    %1186 = vmatprep.subr.bf16.mxu0 %v211
    %1187 = vmatpush1.bf16.msra.mxu0 %v210
    %1188 = vmatprep.subr.bf16.mxu0 %v215
    %1189 = vmatpush1.bf16.msra.mxu0 %v214
    %1190 = vmatprep.subr.bf16.mxu0 %v219
    %1191 = vmatpush1.bf16.msra.mxu0 %v218
    %1192 = vmatprep.subr.bf16.mxu0 %v223
    %1193 = vmatpush1.bf16.msra.mxu0 %v222
    %1194 = vmatprep.subr.bf16.mxu0 %v227
    %1195 = vmatpush1.bf16.msra.mxu0 %v226
    %1196 = vmatprep.subr.bf16.mxu0 %v231
    %1197 = vmatpush1.bf16.msra.mxu0 %v230
    %1198 = vmatprep.subr.bf16.mxu0 %v235
    %1199 = vmatpush1.bf16.msra.mxu0 %v234
    %1200 = vmatprep.subr.bf16.mxu0 0
    %1201 = vmatpush1.bf16.msra.mxu0 0
    %1202 = vmatprep.subr.bf16.mxu0 0
    %1203 = vmatpush1.bf16.msra.mxu0 0
    %1204 = vmatprep.subr.bf16.mxu0 0
    %1205 = vmatpush1.bf16.msra.mxu0 0
    %1206 = vmatprep.subr.bf16.mxu0 0
    %1207 = vmatpush1.bf16.msra.mxu0 0
    %1208 = vmatprep.subr.bf16.mxu0 0
    %1209 = vmatpush1.bf16.msra.mxu0 0
    %1210 = vmatprep.subr.bf16.mxu0 0
    %1211 = vmatpush1.bf16.msra.mxu0 0
    %1212 = vmatprep.subr.bf16.mxu0 0
    %1213 = vmatpush1.bf16.msra.mxu0 0
    %1214 = vmatprep.subr.bf16.mxu0 0
    %1215 = vmatpush1.bf16.msra.mxu0 0
    %1216 = vmatprep.mubr.bf16.mxu0 0
    %1217 = vmatmul.mubr.bf16.gmra.mrb[0].mxu0 %v1142
    %v1218 = vpop.f32.mrb[0].mxu0
    %v1219 = vadd.f32 0.0, %v1218
    %v1220 = vpop.f32.mrb[0].mxu0
    %v1221 = vadd.f32 0.0, %v1220
    %v1222 = vpop.f32.mrb[0].mxu0
    %v1223 = vpop.f32.mrb[0].mxu0
    %1224 = vdwg.mxu0
    %v1225 = vadd.f32 %v1138, %v1178
    %v1226 = vadd.f32 %v1139, %v1180
    %v1227 = vadd.f32 %v1140, %v1219
    %v1228 = vadd.f32 %v1141, %v1221
    %v1229 = vxor.u32 %v1225, 2147483648
    %v1230 = vxor.u32 %v1226, 2147483648
    %v1231 = vxor.u32 %v1227, 2147483648
    %v1232 = vxor.u32 %v1228, 2147483648
    %v1233 = vmul.f32 %v1229, 1.442695
    %v1234 = vpow.pop %v1233
    %v1235 = vmul.f32 %v1230, 1.442695
    %v1236 = vpow.pop %v1235
    %v1237 = vmul.f32 %v1231, 1.442695
    %v1238 = vpow.pop %v1237
    %v1239 = vmul.f32 %v1232, 1.442695
    %v1240 = vpow.pop %v1239
    %v1241 = vadd.f32 %v1234, 1.0
    %v1242 = vadd.f32 %v1236, 1.0
    %v1243 = vadd.f32 %v1238, 1.0
    %v1244 = vadd.f32 %v1240, 1.0
    %v1245 = vrcp.pop %v1241
    %v1246 = vmul.f32 1.0, %v1245
    %v1247 = vrcp.pop %v1242
    %v1248 = vmul.f32 1.0, %v1247
    %v1249 = vrcp.pop %v1243
    %v1250 = vmul.f32 1.0, %v1249
    %v1251 = vrcp.pop %v1244
    %v1252 = vmul.f32 1.0, %v1251
    %v1253 = vmul.f32 %v1250, 2.0
    %v1254 = vsub.f32 %v1253, 1.0
    %v1255 = vmul.f32 %v1248, %v1132
    %v1256 = vmul.f32 %v1246, %v1254
    %v1257 = vadd.f32 %v1255, %v1256
    %v1258 = vtanh.pop %v1257
    %v1259 = vmul.f32 %v1252, %v1258
    %1260 = vst [vmem:[#allocation2] sm:$0xff] %v1259
    %1261 = vst [vmem:[#allocation3] sm:$0xff] %v1257
    // Predicated region
    $region34: #{tpu_custom_call.1} parent=1 // pred_check
      %p1262 = pneg %p60
    $region35: #{tpu_custom_call.1} parent=1 // pred_check_branch
      %1264 = sbr.rel (%p1262) target = $region37
    $region36: #{tpu_custom_call.1} parent=1 // pred_region
      %v1265 = vld [vmem:[#allocation9] sm:$0xff]
      %v1266 = vld [vmem:[#allocation9 + $0x8] sm:$0xff]
      %v1267 = vld [vmem:[#allocation9 + $0x10] sm:$0xff]
      %v1268 = vld [vmem:[#allocation9 + $0x18] sm:$0xff]
      %v1269 = vld [vmem:[#allocation9 + $0x20] sm:$0xff]
      %v1270 = vld [vmem:[#allocation9 + $0x28] sm:$0xff]
      %v1271 = vld [vmem:[#allocation9 + $0x30] sm:$0xff]
      %v1272 = vld [vmem:[#allocation9 + $0x38] sm:$0xff]
      %v1273 = vld [vmem:[#allocation9 + $0x40] sm:$0xff]
      %v1274 = vld [vmem:[#allocation9 + $0x48] sm:$0xff]
      %v1275 = vld [vmem:[#allocation9 + $0x50] sm:$0xff]
      %v1276 = vld [vmem:[#allocation9 + $0x58] sm:$0xff]
      %v1277 = vld [vmem:[#allocation9 + $0x60] sm:$0xff]
      %v1278 = vld [vmem:[#allocation9 + $0x68] sm:$0xff]
      %v1279 = vld [vmem:[#allocation9 + $0x70] sm:$0xff]
      %v1280 = vld [vmem:[#allocation9 + $0x78] sm:$0xff]
      %v1281 = vld [vmem:[%s3] sm:$0x1]
      %v1283 = vlaneseq
      %v1284 = vshrl.u32 %v1283, 7
      %v1285 = vsub.s32 0, %v1284
      %v1286 = vrot.slane %v1281, %v1285
      %1288 = vmatprep.subr.mxu0 0.0
      %1289 = vmatpush1.msra.mxu0 %v1265
      %1290 = vmatprep.subr.mxu0 0.0
      %1291 = vmatpush1.msra.mxu0 %v1266
      %1292 = vmatprep.subr.mxu0 0.0
      %1293 = vmatpush1.msra.mxu0 %v1267
      %1294 = vmatprep.subr.mxu0 0.0
      %1295 = vmatpush1.msra.mxu0 %v1268
      %1296 = vmatprep.subr.mxu0 0.0
      %1297 = vmatpush1.msra.mxu0 %v1269
      %1298 = vmatprep.subr.mxu0 0.0
      %1299 = vmatpush1.msra.mxu0 %v1270
      %1300 = vmatprep.subr.mxu0 0.0
      %1301 = vmatpush1.msra.mxu0 %v1271
      %1302 = vmatprep.subr.mxu0 0.0
      %1303 = vmatpush1.msra.mxu0 %v1272
      %1304 = vmatprep.subr.mxu0 0.0
      %1305 = vmatpush1.msra.mxu0 %v1273
      %1306 = vmatprep.subr.mxu0 0.0
      %1307 = vmatpush1.msra.mxu0 %v1274
      %1308 = vmatprep.subr.mxu0 0.0
      %1309 = vmatpush1.msra.mxu0 %v1275
      %1310 = vmatprep.subr.mxu0 0.0
      %1311 = vmatpush1.msra.mxu0 %v1276
      %1312 = vmatprep.subr.mxu0 0.0
      %1313 = vmatpush1.msra.mxu0 %v1277
      %1314 = vmatprep.subr.mxu0 0.0
      %1315 = vmatpush1.msra.mxu0 %v1278
      %1316 = vmatprep.subr.mxu0 0.0
      %1317 = vmatpush1.msra.mxu0 %v1279
      %1318 = vmatprep.subr.mxu0 0.0
      %1319 = vmatpush1.msra.mxu0 %v1280
      %1320 = vmatprep.subr.mxu0 0.0
      %1321 = vmatpush1.msra.mxu0 0.0
      %1322 = vmatprep.subr.mxu0 0.0
      %1323 = vmatpush1.msra.mxu0 0.0
      %1324 = vmatprep.subr.mxu0 0.0
      %1325 = vmatpush1.msra.mxu0 0.0
      %1326 = vmatprep.subr.mxu0 0.0
      %1327 = vmatpush1.msra.mxu0 0.0
      %1328 = vmatprep.subr.mxu0 0.0
      %1329 = vmatpush1.msra.mxu0 0.0
      %1330 = vmatprep.subr.mxu0 0.0
      %1331 = vmatpush1.msra.mxu0 0.0
      %1332 = vmatprep.subr.mxu0 0.0
      %1333 = vmatpush1.msra.mxu0 0.0
      %1334 = vmatprep.subr.mxu0 0.0
      %1335 = vmatpush1.msra.mxu0 0.0
      %1336 = vmatprep.subr.mxu0 0.0
      %1337 = vmatpush1.msra.mxu0 0.0
      %1338 = vmatprep.subr.mxu0 0.0
      %1339 = vmatpush1.msra.mxu0 0.0
      %1340 = vmatprep.subr.mxu0 0.0
      %1341 = vmatpush1.msra.mxu0 0.0
      %1342 = vmatprep.subr.mxu0 0.0
      %1343 = vmatpush1.msra.mxu0 0.0
      %1344 = vmatprep.subr.mxu0 0.0
      %1345 = vmatpush1.msra.mxu0 0.0
      %1346 = vmatprep.subr.mxu0 0.0
      %1347 = vmatpush1.msra.mxu0 0.0
      %1348 = vmatprep.subr.mxu0 0.0
      %1349 = vmatpush1.msra.mxu0 0.0
      %1350 = vmatprep.subr.mxu0 0.0
      %1351 = vmatpush1.msra.mxu0 0.0
      %1352 = vmatprep.mubr.f32.mxu0 0.0
      %1353 = vmatmul.mubr.f32.gmra.mrb[0].mxu0 %v1259
      %v1354 = vpop.f32.mrb[0].mxu0
      %v1355 = vadd.f32 %v1286, %v1354
      %v1356 = vpop.f32.mrb[0].mxu0
      %1357 = vdwg.mxu0
      %1358 = vst [vmem:[#allocation10] sm:$0xff] %v1355
    $region37: #{tpu_custom_call.1} parent=1 // pred_fallthru
      _
    // Predicated region
    $region38: #{tpu_custom_call.1} parent=1 // pred_check
      _
    $region39: #{tpu_custom_call.1} parent=1 // pred_check_branch
      %1360 = sbr.rel (0) target = $region41
    $region40: #{tpu_custom_call.1} parent=1 // pred_region
      %s1362 = ssub.s32 128, 128
      %1363 = vsyncadd [#allocation6], %s1362
      %s1365 = sshll.u32 [#allocation10], 4
      %s1366 = int_to_ptr.vmem [resolvable:$true] %s1365
      %1368 = dma.vmem_to_hbm [thread:$0]  %s1366, 128, %s4, [#allocation6]
    $region41: #{tpu_custom_call.1} parent=1 // pred_fallthru
      _
    // Predicated region
    $region42: #{tpu_custom_call.1} parent=1 // pred_check
      _
    $region43: #{tpu_custom_call.1} parent=1 // pred_check_branch
      %1370 = sbr.rel (0) target = $region45
    $region44: #{tpu_custom_call.1} parent=1 // pred_region
      %1371 = dma.done [#allocation6], 128
    $region45: #{tpu_custom_call.1} parent=1 // pred_fallthru
      _
    %1372 = vsyncpa [#allocation5], 1
    %1373 = vsyncpa [#allocation8], 1
    %1374 = vsyncpa [#allocation6], 1

</llo_original>
